<compile_context>
chip_gen: v5e
topology: v5e:2x2
jax: 0.10.0
libtpu: 0.0.40
codegen_flags: <defaults>
</compile_context>

<pallas_src>
import math

import jax
import jax.numpy as jnp
from jax import lax
from jax.experimental import pallas as pl
from jax.experimental.pallas import tpu as pltpu

# ---------------------------------------------------------------- config ----
D_MODEL = 32
N_HEADS = 4
D_HEAD = D_MODEL // N_HEADS
D_FF = 64
N_LAYERS = 2
LN_EPS = 1e-6
NEG_INF = -1e9


# ---------------------------------------------------------------- kernel ----
def _encoder_stack_kernel(x_ref, m_ref,
                          wqkv_ref, bqkv_ref, wo_ref, bo_ref,
                          w1_ref, b1_ref, w2_ref, b2_ref,
                          ln1g_ref, ln1b_ref, ln2g_ref, ln2b_ref,
                          o_ref):
    """One batch element per grid step; the full N_LAYERS encoder stack fused.

    x_ref: (1, S, D)   m_ref: (1, 1, S) float key mask (1 = attend, 0 = masked)
    weights carry a leading layer axis L and are pre-transposed to (Din, Dout).
    """
    x = x_ref[0]                                  # (S, D) f32, stays in VMEM/vregs
    S = x.shape[0]
    keep = jnp.broadcast_to(m_ref[0] > 0.5, (S, S))   # hoisted once, reused by all heads
    scale = 1.0 / math.sqrt(D_HEAD)

    def layer_norm(v, g, b):
        # annotated-transformer LayerNorm: g * (v - mean) / (std_unbiased + eps) + b
        mean = jnp.mean(v, axis=-1, keepdims=True)
        diff = v - mean
        var_unbiased = jnp.sum(diff * diff, axis=-1, keepdims=True) / (D_MODEL - 1)
        return g * diff / (jnp.sqrt(var_unbiased) + LN_EPS) + b

    for l in range(N_LAYERS):                     # static unroll over layers
        # ----------------- self-attention sublayer (pre-norm residual) ------
        xn = layer_norm(x, ln1g_ref[l], ln1b_ref[l])
        qkv = jnp.dot(xn, wqkv_ref[l], preferred_element_type=jnp.float32) + bqkv_ref[l]

        heads = []
        for h in range(N_HEADS):                  # static unroll, lane slices (no transposes)
            q_h = qkv[:, h * D_HEAD:(h + 1) * D_HEAD]
            k_h = qkv[:, D_MODEL + h * D_HEAD:D_MODEL + (h + 1) * D_HEAD]
            v_h = qkv[:, 2 * D_MODEL + h * D_HEAD:2 * D_MODEL + (h + 1) * D_HEAD]
            # q @ k^T via dot_general contracting the head dim (avoids in-kernel .T)
            s = lax.dot_general(q_h, k_h, (((1,), (1,)), ((), ())),
                                preferred_element_type=jnp.float32) * scale
            s = jnp.where(keep, s, NEG_INF)       # masked_fill(mask == 0, -1e9)
            mx = jnp.max(s, axis=-1, keepdims=True)
            p = jnp.exp(s - mx)
            p = p / jnp.sum(p, axis=-1, keepdims=True)
            heads.append(jnp.dot(p, v_h, preferred_element_type=jnp.float32))
        att = jnp.concatenate(heads, axis=-1)     # (S, D_MODEL) lane-dense head merge
        att = jnp.dot(att, wo_ref[l], preferred_element_type=jnp.float32) + bo_ref[l]
        x = x + att                               # dropout = identity (eval mode)

        # ----------------- feed-forward sublayer -----------------------------
        xn = layer_norm(x, ln2g_ref[l], ln2b_ref[l])
        hid = jnp.maximum(
            jnp.dot(xn, w1_ref[l], preferred_element_type=jnp.float32) + b1_ref[l], 0.0)
        ffn = jnp.dot(hid, w2_ref[l], preferred_element_type=jnp.float32) + b2_ref[l]
        x = x + ffn

    o_ref[0] = x


# --------------------------------------------------------------- wrapper ----
_WEIGHT_NAMES = ("wqkv", "bqkv", "wo", "bo", "w1", "b1", "w2", "b2",
                 "ln1_g", "ln1_b", "ln2_g", "ln2_b")


def _const_spec(shape):
    nd = len(shape)
    return pl.BlockSpec(shape, lambda b, _nd=nd: (0,) * _nd)


def encoder_forward(params, x, src_mask):
    """x: (B, S, D_MODEL) f32, src_mask: (B, 1, S) (1 = attend, 0 = masked)."""
    B, S, _ = x.shape
    mask = src_mask.reshape(B, 1, S).astype(jnp.float32)
    weights = [params[n] for n in _WEIGHT_NAMES]
    return pl.pallas_call(
        _encoder_stack_kernel,
        out_shape=jax.ShapeDtypeStruct((B, S, D_MODEL), jnp.float32),
        grid=(B,),
        in_specs=[pl.BlockSpec((1, S, D_MODEL), lambda b: (b, 0, 0)),
                  pl.BlockSpec((1, 1, S), lambda b: (b, 0, 0))]
                 + [_const_spec(w.shape) for w in weights],
        out_specs=pl.BlockSpec((1, S, D_MODEL), lambda b: (b, 0, 0)),
        compiler_params=pltpu.CompilerParams(dimension_semantics=("parallel",)),
    )(x, mask, *weights)


# ---------------------------------------------------------------- params ----
def _linear_init(key, din, dout):
    # mimic torch nn.Linear default init (weight stored (dout, din) like PyTorch)
    k1, k2 = jax.random.split(key)
    bound = 1.0 / math.sqrt(din)
    w = jax.random.uniform(k1, (dout, din), jnp.float32, -bound, bound)
    b = jax.random.uniform(k2, (dout,), jnp.float32, -bound, bound)
    return w, b


def init_params(key):
    acc = {n: [] for n in _WEIGHT_NAMES}
    for lkey in jax.random.split(key, N_LAYERS):
        kq, kk, kv, ko, kf1, kf2 = jax.random.split(lkey, 6)
        wq, bq = _linear_init(kq, D_MODEL, D_MODEL)
        wk, bk = _linear_init(kk, D_MODEL, D_MODEL)
        wv, bv = _linear_init(kv, D_MODEL, D_MODEL)
        wo, bo = _linear_init(ko, D_MODEL, D_MODEL)
        w1, b1 = _linear_init(kf1, D_MODEL, D_FF)
        w2, b2 = _linear_init(kf2, D_FF, D_MODEL)
        # one-time host-side packing: QKV concatenated, all weights pre-transposed
        # to (Din, Dout) so the kernel never transposes.
        acc["wqkv"].append(jnp.concatenate([wq, wk, wv], axis=0).T)   # (D, 3D)
        acc["bqkv"].append(jnp.concatenate([bq, bk, bv])[None, :])    # (1, 3D)
        acc["wo"].append(wo.T)
        acc["bo"].append(bo[None, :])
        acc["w1"].append(w1.T)
        acc["b1"].append(b1[None, :])
        acc["w2"].append(w2.T)
        acc["b2"].append(b2[None, :])
        acc["ln1_g"].append(jnp.ones((1, D_MODEL), jnp.float32))
        acc["ln1_b"].append(jnp.zeros((1, D_MODEL), jnp.float32))
        acc["ln2_g"].append(jnp.ones((1, D_MODEL), jnp.float32))
        acc["ln2_b"].append(jnp.zeros((1, D_MODEL), jnp.float32))
    return {n: jnp.stack(v) for n, v in acc.items()}


# ------------------------------------------------------------------ main ----
if __name__ == "__main__":
    B, S = 2, 16

    root = jax.random.PRNGKey(0)
    kp, kx = jax.random.split(root)

    params = init_params(kp)
    x = jax.random.normal(kx, (B, S, D_MODEL), jnp.float32)

    # padding-style src_mask (1 = attend, 0 = masked), shape (B, 1, S) as in PyTorch
    lens = jnp.array([S, 12])
    src_mask = (jnp.arange(S)[None, :] < lens[:, None]).astype(jnp.float32)[:, None, :]

    out = jax.jit(encoder_forward)(params, x, src_mask)
    out = jax.block_until_ready(out)
    assert out.shape == (B, S, D_MODEL) and out.dtype == jnp.float32
    print("KERNEL_OK")
</pallas_src>

<mosaic_0001>
module attributes {stable_mosaic.version = 11 : i64} {
  func.func @_encoder_stack_kernel(%arg0: i32, %arg1: memref<1x16x32xf32, #tpu.memory_space<vmem>>, %arg2: memref<1x1x16xf32, #tpu.memory_space<vmem>>, %arg3: memref<2x32x96xf32, #tpu.memory_space<vmem>>, %arg4: memref<2x1x96xf32, #tpu.memory_space<vmem>>, %arg5: memref<2x32x32xf32, #tpu.memory_space<vmem>>, %arg6: memref<2x1x32xf32, #tpu.memory_space<vmem>>, %arg7: memref<2x32x64xf32, #tpu.memory_space<vmem>>, %arg8: memref<2x1x64xf32, #tpu.memory_space<vmem>>, %arg9: memref<2x64x32xf32, #tpu.memory_space<vmem>>, %arg10: memref<2x1x32xf32, #tpu.memory_space<vmem>>, %arg11: memref<2x1x32xf32, #tpu.memory_space<vmem>>, %arg12: memref<2x1x32xf32, #tpu.memory_space<vmem>>, %arg13: memref<2x1x32xf32, #tpu.memory_space<vmem>>, %arg14: memref<2x1x32xf32, #tpu.memory_space<vmem>>, %arg15: memref<1x16x32xf32, #tpu.memory_space<vmem>>) attributes {dimension_semantics = [#tpu.dimension_semantics<parallel>], iteration_bounds = array<i64: 2>, scalar_prefetch = 0 : i64, scratch_operands = 0 : i64, tpu.core_type = #tpu.core_type<tc>, window_params = [{transform_indices = @transform_0, window_bounds = array<i64: 1, 16, 32>}, {transform_indices = @transform_1, window_bounds = array<i64: 1, 1, 16>}, {pipeline_mode = #tpu.pipeline_mode<synchronous>, transform_indices = @transform_2, window_bounds = array<i64: 2, 32, 96>}, {pipeline_mode = #tpu.pipeline_mode<synchronous>, transform_indices = @transform_3, window_bounds = array<i64: 2, 1, 96>}, {pipeline_mode = #tpu.pipeline_mode<synchronous>, transform_indices = @transform_4, window_bounds = array<i64: 2, 32, 32>}, {pipeline_mode = #tpu.pipeline_mode<synchronous>, transform_indices = @transform_5, window_bounds = array<i64: 2, 1, 32>}, {pipeline_mode = #tpu.pipeline_mode<synchronous>, transform_indices = @transform_6, window_bounds = array<i64: 2, 32, 64>}, {pipeline_mode = #tpu.pipeline_mode<synchronous>, transform_indices = @transform_7, window_bounds = array<i64: 2, 1, 64>}, {pipeline_mode = #tpu.pipeline_mode<synchronous>, transform_indices = @transform_8, window_bounds = array<i64: 2, 64, 32>}, {pipeline_mode = #tpu.pipeline_mode<synchronous>, transform_indices = @transform_9, window_bounds = array<i64: 2, 1, 32>}, {pipeline_mode = #tpu.pipeline_mode<synchronous>, transform_indices = @transform_10, window_bounds = array<i64: 2, 1, 32>}, {pipeline_mode = #tpu.pipeline_mode<synchronous>, transform_indices = @transform_11, window_bounds = array<i64: 2, 1, 32>}, {pipeline_mode = #tpu.pipeline_mode<synchronous>, transform_indices = @transform_12, window_bounds = array<i64: 2, 1, 32>}, {pipeline_mode = #tpu.pipeline_mode<synchronous>, transform_indices = @transform_13, window_bounds = array<i64: 2, 1, 32>}, {transform_indices = @transform_14, window_bounds = array<i64: 1, 16, 32>}]} {
    %c0 = arith.constant 0 : index
    %c0_0 = arith.constant 0 : index
    %c0_1 = arith.constant 0 : index
    %0 = vector.load %arg1[%c0, %c0_0, %c0_1] : memref<1x16x32xf32, #tpu.memory_space<vmem>>, vector<1x16x32xf32>
    %1 = vector.shape_cast %0 : vector<1x16x32xf32> to vector<16x32xf32>
    %c0_2 = arith.constant 0 : index
    %c0_3 = arith.constant 0 : index
    %c0_4 = arith.constant 0 : index
    %2 = vector.load %arg2[%c0_2, %c0_3, %c0_4] : memref<1x1x16xf32, #tpu.memory_space<vmem>>, vector<1x1x16xf32>
    %3 = vector.shape_cast %2 : vector<1x1x16xf32> to vector<1x16xf32>
    %cst = arith.constant 5.000000e-01 : f32
    %4 = vector.broadcast %cst : f32 to vector<1x16xf32>
    %5 = arith.cmpf ogt, %3, %4 : vector<1x16xf32>
    %6 = vector.shape_cast %5 : vector<1x16xi1> to vector<1x16xi1>
    %7 = vector.broadcast %6 : vector<1x16xi1> to vector<16x16xi1>
    %c0_5 = arith.constant 0 : index
    %c0_6 = arith.constant 0 : index
    %c0_7 = arith.constant 0 : index
    %8 = vector.load %arg11[%c0_5, %c0_6, %c0_7] : memref<2x1x32xf32, #tpu.memory_space<vmem>>, vector<1x1x32xf32>
    %9 = vector.shape_cast %8 : vector<1x1x32xf32> to vector<1x32xf32>
    %c0_8 = arith.constant 0 : index
    %c0_9 = arith.constant 0 : index
    %c0_10 = arith.constant 0 : index
    %10 = vector.load %arg12[%c0_8, %c0_9, %c0_10] : memref<2x1x32xf32, #tpu.memory_space<vmem>>, vector<1x1x32xf32>
    %11 = vector.shape_cast %10 : vector<1x1x32xf32> to vector<1x32xf32>
    %cst_11 = arith.constant dense<0.000000e+00> : vector<16xf32>
    %12 = vector.multi_reduction <add>, %1, %cst_11 [1] : vector<16x32xf32> to vector<16xf32>
    %13 = vector.shape_cast %12 : vector<16xf32> to vector<16x1xf32>
    %cst_12 = arith.constant 3.200000e+01 : f32
    %14 = vector.broadcast %cst_12 : f32 to vector<16x1xf32>
    %15 = arith.divf %13, %14 : vector<16x1xf32>
    %16 = vector.broadcast %15 : vector<16x1xf32> to vector<16x32xf32>
    %17 = arith.subf %1, %16 : vector<16x32xf32>
    %18 = arith.mulf %17, %17 : vector<16x32xf32>
    %cst_13 = arith.constant dense<0.000000e+00> : vector<16xf32>
    %19 = vector.multi_reduction <add>, %18, %cst_13 [1] : vector<16x32xf32> to vector<16xf32>
    %20 = vector.shape_cast %19 : vector<16xf32> to vector<16x1xf32>
    %cst_14 = arith.constant 3.100000e+01 : f32
    %21 = vector.broadcast %cst_14 : f32 to vector<16x1xf32>
    %22 = arith.divf %20, %21 : vector<16x1xf32>
    %23 = vector.broadcast %9 : vector<1x32xf32> to vector<16x32xf32>
    %24 = arith.mulf %23, %17 : vector<16x32xf32>
    %25 = math.sqrt %22 : vector<16x1xf32>
    %cst_15 = arith.constant 9.99999997E-7 : f32
    %26 = vector.broadcast %cst_15 : f32 to vector<16x1xf32>
    %27 = arith.addf %25, %26 : vector<16x1xf32>
    %28 = vector.broadcast %27 : vector<16x1xf32> to vector<16x32xf32>
    %29 = arith.divf %24, %28 : vector<16x32xf32>
    %30 = vector.broadcast %11 : vector<1x32xf32> to vector<16x32xf32>
    %31 = arith.addf %29, %30 : vector<16x32xf32>
    %c0_16 = arith.constant 0 : index
    %c0_17 = arith.constant 0 : index
    %c0_18 = arith.constant 0 : index
    %32 = vector.load %arg3[%c0_16, %c0_17, %c0_18] : memref<2x32x96xf32, #tpu.memory_space<vmem>>, vector<1x32x96xf32>
    %33 = vector.shape_cast %32 : vector<1x32x96xf32> to vector<32x96xf32>
    %cst_19 = arith.constant dense<0.000000e+00> : vector<16x96xf32>
    %34 = tpu.matmul %31, %33, %cst_19 {dimension_numbers = #tpu.dot_dimension_numbers<[1], [0], [0], [1], [0, 0, 1, 1], [], []>} : vector<16x32xf32>, vector<32x96xf32>, vector<16x96xf32> -> vector<16x96xf32>
    %c0_20 = arith.constant 0 : index
    %c0_21 = arith.constant 0 : index
    %c0_22 = arith.constant 0 : index
    %35 = vector.load %arg4[%c0_20, %c0_21, %c0_22] : memref<2x1x96xf32, #tpu.memory_space<vmem>>, vector<1x1x96xf32>
    %36 = vector.shape_cast %35 : vector<1x1x96xf32> to vector<1x96xf32>
    %37 = vector.broadcast %36 : vector<1x96xf32> to vector<16x96xf32>
    %38 = arith.addf %34, %37 : vector<16x96xf32>
    %39 = vector.extract_strided_slice %38 {offsets = [0, 0], sizes = [16, 8], strides = [1, 1]} : vector<16x96xf32> to vector<16x8xf32>
    %40 = vector.extract_strided_slice %38 {offsets = [0, 32], sizes = [16, 8], strides = [1, 1]} : vector<16x96xf32> to vector<16x8xf32>
    %41 = vector.extract_strided_slice %38 {offsets = [0, 64], sizes = [16, 8], strides = [1, 1]} : vector<16x96xf32> to vector<16x8xf32>
    %cst_23 = arith.constant dense<0.000000e+00> : vector<16x16xf32>
    %42 = tpu.matmul %39, %40, %cst_23 {dimension_numbers = #tpu.dot_dimension_numbers<[1], [1], [0], [0], [0, 0, 1, 0], [], []>} : vector<16x8xf32>, vector<16x8xf32>, vector<16x16xf32> -> vector<16x16xf32>
    %cst_24 = arith.constant 0.353553385 : f32
    %43 = vector.broadcast %cst_24 : f32 to vector<16x16xf32>
    %44 = arith.mulf %42, %43 : vector<16x16xf32>
    %cst_25 = arith.constant -1.000000e+09 : f32
    %45 = vector.broadcast %cst_25 : f32 to vector<16x16xf32>
    %46 = arith.select %7, %44, %45 : vector<16x16xi1>, vector<16x16xf32>
    %cst_26 = arith.constant dense<0xFF800000> : vector<16xf32>
    %47 = vector.multi_reduction <maximumf>, %46, %cst_26 [1] : vector<16x16xf32> to vector<16xf32>
    %48 = vector.shape_cast %47 : vector<16xf32> to vector<16x1xf32>
    %49 = vector.broadcast %48 : vector<16x1xf32> to vector<16x16xf32>
    %50 = arith.subf %46, %49 : vector<16x16xf32>
    %51 = math.exp %50 : vector<16x16xf32>
    %cst_27 = arith.constant dense<0.000000e+00> : vector<16xf32>
    %52 = vector.multi_reduction <add>, %51, %cst_27 [1] : vector<16x16xf32> to vector<16xf32>
    %53 = vector.shape_cast %52 : vector<16xf32> to vector<16x1xf32>
    %54 = vector.broadcast %53 : vector<16x1xf32> to vector<16x16xf32>
    %55 = arith.divf %51, %54 : vector<16x16xf32>
    %cst_28 = arith.constant dense<0.000000e+00> : vector<16x8xf32>
    %56 = tpu.matmul %55, %41, %cst_28 {dimension_numbers = #tpu.dot_dimension_numbers<[1], [0], [0], [1], [0, 0, 1, 1], [], []>} : vector<16x16xf32>, vector<16x8xf32>, vector<16x8xf32> -> vector<16x8xf32>
    %57 = vector.extract_strided_slice %38 {offsets = [0, 8], sizes = [16, 8], strides = [1, 1]} : vector<16x96xf32> to vector<16x8xf32>
    %58 = vector.extract_strided_slice %38 {offsets = [0, 40], sizes = [16, 8], strides = [1, 1]} : vector<16x96xf32> to vector<16x8xf32>
    %59 = vector.extract_strided_slice %38 {offsets = [0, 72], sizes = [16, 8], strides = [1, 1]} : vector<16x96xf32> to vector<16x8xf32>
    %cst_29 = arith.constant dense<0.000000e+00> : vector<16x16xf32>
    %60 = tpu.matmul %57, %58, %cst_29 {dimension_numbers = #tpu.dot_dimension_numbers<[1], [1], [0], [0], [0, 0, 1, 0], [], []>} : vector<16x8xf32>, vector<16x8xf32>, vector<16x16xf32> -> vector<16x16xf32>
    %cst_30 = arith.constant 0.353553385 : f32
    %61 = vector.broadcast %cst_30 : f32 to vector<16x16xf32>
    %62 = arith.mulf %60, %61 : vector<16x16xf32>
    %cst_31 = arith.constant -1.000000e+09 : f32
    %63 = vector.broadcast %cst_31 : f32 to vector<16x16xf32>
    %64 = arith.select %7, %62, %63 : vector<16x16xi1>, vector<16x16xf32>
    %cst_32 = arith.constant dense<0xFF800000> : vector<16xf32>
    %65 = vector.multi_reduction <maximumf>, %64, %cst_32 [1] : vector<16x16xf32> to vector<16xf32>
    %66 = vector.shape_cast %65 : vector<16xf32> to vector<16x1xf32>
    %67 = vector.broadcast %66 : vector<16x1xf32> to vector<16x16xf32>
    %68 = arith.subf %64, %67 : vector<16x16xf32>
    %69 = math.exp %68 : vector<16x16xf32>
    %cst_33 = arith.constant dense<0.000000e+00> : vector<16xf32>
    %70 = vector.multi_reduction <add>, %69, %cst_33 [1] : vector<16x16xf32> to vector<16xf32>
    %71 = vector.shape_cast %70 : vector<16xf32> to vector<16x1xf32>
    %72 = vector.broadcast %71 : vector<16x1xf32> to vector<16x16xf32>
    %73 = arith.divf %69, %72 : vector<16x16xf32>
    %cst_34 = arith.constant dense<0.000000e+00> : vector<16x8xf32>
    %74 = tpu.matmul %73, %59, %cst_34 {dimension_numbers = #tpu.dot_dimension_numbers<[1], [0], [0], [1], [0, 0, 1, 1], [], []>} : vector<16x16xf32>, vector<16x8xf32>, vector<16x8xf32> -> vector<16x8xf32>
    %75 = vector.extract_strided_slice %38 {offsets = [0, 16], sizes = [16, 8], strides = [1, 1]} : vector<16x96xf32> to vector<16x8xf32>
    %76 = vector.extract_strided_slice %38 {offsets = [0, 48], sizes = [16, 8], strides = [1, 1]} : vector<16x96xf32> to vector<16x8xf32>
    %77 = vector.extract_strided_slice %38 {offsets = [0, 80], sizes = [16, 8], strides = [1, 1]} : vector<16x96xf32> to vector<16x8xf32>
    %cst_35 = arith.constant dense<0.000000e+00> : vector<16x16xf32>
    %78 = tpu.matmul %75, %76, %cst_35 {dimension_numbers = #tpu.dot_dimension_numbers<[1], [1], [0], [0], [0, 0, 1, 0], [], []>} : vector<16x8xf32>, vector<16x8xf32>, vector<16x16xf32> -> vector<16x16xf32>
    %cst_36 = arith.constant 0.353553385 : f32
    %79 = vector.broadcast %cst_36 : f32 to vector<16x16xf32>
    %80 = arith.mulf %78, %79 : vector<16x16xf32>
    %cst_37 = arith.constant -1.000000e+09 : f32
    %81 = vector.broadcast %cst_37 : f32 to vector<16x16xf32>
    %82 = arith.select %7, %80, %81 : vector<16x16xi1>, vector<16x16xf32>
    %cst_38 = arith.constant dense<0xFF800000> : vector<16xf32>
    %83 = vector.multi_reduction <maximumf>, %82, %cst_38 [1] : vector<16x16xf32> to vector<16xf32>
    %84 = vector.shape_cast %83 : vector<16xf32> to vector<16x1xf32>
    %85 = vector.broadcast %84 : vector<16x1xf32> to vector<16x16xf32>
    %86 = arith.subf %82, %85 : vector<16x16xf32>
    %87 = math.exp %86 : vector<16x16xf32>
    %cst_39 = arith.constant dense<0.000000e+00> : vector<16xf32>
    %88 = vector.multi_reduction <add>, %87, %cst_39 [1] : vector<16x16xf32> to vector<16xf32>
    %89 = vector.shape_cast %88 : vector<16xf32> to vector<16x1xf32>
    %90 = vector.broadcast %89 : vector<16x1xf32> to vector<16x16xf32>
    %91 = arith.divf %87, %90 : vector<16x16xf32>
    %cst_40 = arith.constant dense<0.000000e+00> : vector<16x8xf32>
    %92 = tpu.matmul %91, %77, %cst_40 {dimension_numbers = #tpu.dot_dimension_numbers<[1], [0], [0], [1], [0, 0, 1, 1], [], []>} : vector<16x16xf32>, vector<16x8xf32>, vector<16x8xf32> -> vector<16x8xf32>
    %93 = vector.extract_strided_slice %38 {offsets = [0, 24], sizes = [16, 8], strides = [1, 1]} : vector<16x96xf32> to vector<16x8xf32>
    %94 = vector.extract_strided_slice %38 {offsets = [0, 56], sizes = [16, 8], strides = [1, 1]} : vector<16x96xf32> to vector<16x8xf32>
    %95 = vector.extract_strided_slice %38 {offsets = [0, 88], sizes = [16, 8], strides = [1, 1]} : vector<16x96xf32> to vector<16x8xf32>
    %cst_41 = arith.constant dense<0.000000e+00> : vector<16x16xf32>
    %96 = tpu.matmul %93, %94, %cst_41 {dimension_numbers = #tpu.dot_dimension_numbers<[1], [1], [0], [0], [0, 0, 1, 0], [], []>} : vector<16x8xf32>, vector<16x8xf32>, vector<16x16xf32> -> vector<16x16xf32>
    %cst_42 = arith.constant 0.353553385 : f32
    %97 = vector.broadcast %cst_42 : f32 to vector<16x16xf32>
    %98 = arith.mulf %96, %97 : vector<16x16xf32>
    %cst_43 = arith.constant -1.000000e+09 : f32
    %99 = vector.broadcast %cst_43 : f32 to vector<16x16xf32>
    %100 = arith.select %7, %98, %99 : vector<16x16xi1>, vector<16x16xf32>
    %cst_44 = arith.constant dense<0xFF800000> : vector<16xf32>
    %101 = vector.multi_reduction <maximumf>, %100, %cst_44 [1] : vector<16x16xf32> to vector<16xf32>
    %102 = vector.shape_cast %101 : vector<16xf32> to vector<16x1xf32>
    %103 = vector.broadcast %102 : vector<16x1xf32> to vector<16x16xf32>
    %104 = arith.subf %100, %103 : vector<16x16xf32>
    %105 = math.exp %104 : vector<16x16xf32>
    %cst_45 = arith.constant dense<0.000000e+00> : vector<16xf32>
    %106 = vector.multi_reduction <add>, %105, %cst_45 [1] : vector<16x16xf32> to vector<16xf32>
    %107 = vector.shape_cast %106 : vector<16xf32> to vector<16x1xf32>
    %108 = vector.broadcast %107 : vector<16x1xf32> to vector<16x16xf32>
    %109 = arith.divf %105, %108 : vector<16x16xf32>
    %cst_46 = arith.constant dense<0.000000e+00> : vector<16x8xf32>
    %110 = tpu.matmul %109, %95, %cst_46 {dimension_numbers = #tpu.dot_dimension_numbers<[1], [0], [0], [1], [0, 0, 1, 1], [], []>} : vector<16x16xf32>, vector<16x8xf32>, vector<16x8xf32> -> vector<16x8xf32>
    %111 = tpu.concatenate %56, %74, %92, %110 in 1 : vector<16x8xf32>, vector<16x8xf32>, vector<16x8xf32>, vector<16x8xf32> -> vector<16x32xf32>
    %c0_47 = arith.constant 0 : index
    %c0_48 = arith.constant 0 : index
    %c0_49 = arith.constant 0 : index
    %112 = vector.load %arg5[%c0_47, %c0_48, %c0_49] : memref<2x32x32xf32, #tpu.memory_space<vmem>>, vector<1x32x32xf32>
    %113 = vector.shape_cast %112 : vector<1x32x32xf32> to vector<32x32xf32>
    %cst_50 = arith.constant dense<0.000000e+00> : vector<16x32xf32>
    %114 = tpu.matmul %111, %113, %cst_50 {dimension_numbers = #tpu.dot_dimension_numbers<[1], [0], [0], [1], [0, 0, 1, 1], [], []>} : vector<16x32xf32>, vector<32x32xf32>, vector<16x32xf32> -> vector<16x32xf32>
    %c0_51 = arith.constant 0 : index
    %c0_52 = arith.constant 0 : index
    %c0_53 = arith.constant 0 : index
    %115 = vector.load %arg6[%c0_51, %c0_52, %c0_53] : memref<2x1x32xf32, #tpu.memory_space<vmem>>, vector<1x1x32xf32>
    %116 = vector.shape_cast %115 : vector<1x1x32xf32> to vector<1x32xf32>
    %117 = vector.broadcast %116 : vector<1x32xf32> to vector<16x32xf32>
    %118 = arith.addf %114, %117 : vector<16x32xf32>
    %119 = arith.addf %1, %118 : vector<16x32xf32>
    %c0_54 = arith.constant 0 : index
    %c0_55 = arith.constant 0 : index
    %c0_56 = arith.constant 0 : index
    %120 = vector.load %arg13[%c0_54, %c0_55, %c0_56] : memref<2x1x32xf32, #tpu.memory_space<vmem>>, vector<1x1x32xf32>
    %121 = vector.shape_cast %120 : vector<1x1x32xf32> to vector<1x32xf32>
    %c0_57 = arith.constant 0 : index
    %c0_58 = arith.constant 0 : index
    %c0_59 = arith.constant 0 : index
    %122 = vector.load %arg14[%c0_57, %c0_58, %c0_59] : memref<2x1x32xf32, #tpu.memory_space<vmem>>, vector<1x1x32xf32>
    %123 = vector.shape_cast %122 : vector<1x1x32xf32> to vector<1x32xf32>
    %cst_60 = arith.constant dense<0.000000e+00> : vector<16xf32>
    %124 = vector.multi_reduction <add>, %119, %cst_60 [1] : vector<16x32xf32> to vector<16xf32>
    %125 = vector.shape_cast %124 : vector<16xf32> to vector<16x1xf32>
    %cst_61 = arith.constant 3.200000e+01 : f32
    %126 = vector.broadcast %cst_61 : f32 to vector<16x1xf32>
    %127 = arith.divf %125, %126 : vector<16x1xf32>
    %128 = vector.broadcast %127 : vector<16x1xf32> to vector<16x32xf32>
    %129 = arith.subf %119, %128 : vector<16x32xf32>
    %130 = arith.mulf %129, %129 : vector<16x32xf32>
    %cst_62 = arith.constant dense<0.000000e+00> : vector<16xf32>
    %131 = vector.multi_reduction <add>, %130, %cst_62 [1] : vector<16x32xf32> to vector<16xf32>
    %132 = vector.shape_cast %131 : vector<16xf32> to vector<16x1xf32>
    %cst_63 = arith.constant 3.100000e+01 : f32
    %133 = vector.broadcast %cst_63 : f32 to vector<16x1xf32>
    %134 = arith.divf %132, %133 : vector<16x1xf32>
    %135 = vector.broadcast %121 : vector<1x32xf32> to vector<16x32xf32>
    %136 = arith.mulf %135, %129 : vector<16x32xf32>
    %137 = math.sqrt %134 : vector<16x1xf32>
    %cst_64 = arith.constant 9.99999997E-7 : f32
    %138 = vector.broadcast %cst_64 : f32 to vector<16x1xf32>
    %139 = arith.addf %137, %138 : vector<16x1xf32>
    %140 = vector.broadcast %139 : vector<16x1xf32> to vector<16x32xf32>
    %141 = arith.divf %136, %140 : vector<16x32xf32>
    %142 = vector.broadcast %123 : vector<1x32xf32> to vector<16x32xf32>
    %143 = arith.addf %141, %142 : vector<16x32xf32>
    %c0_65 = arith.constant 0 : index
    %c0_66 = arith.constant 0 : index
    %c0_67 = arith.constant 0 : index
    %144 = vector.load %arg7[%c0_65, %c0_66, %c0_67] : memref<2x32x64xf32, #tpu.memory_space<vmem>>, vector<1x32x64xf32>
    %145 = vector.shape_cast %144 : vector<1x32x64xf32> to vector<32x64xf32>
    %cst_68 = arith.constant dense<0.000000e+00> : vector<16x64xf32>
    %146 = tpu.matmul %143, %145, %cst_68 {dimension_numbers = #tpu.dot_dimension_numbers<[1], [0], [0], [1], [0, 0, 1, 1], [], []>} : vector<16x32xf32>, vector<32x64xf32>, vector<16x64xf32> -> vector<16x64xf32>
    %c0_69 = arith.constant 0 : index
    %c0_70 = arith.constant 0 : index
    %c0_71 = arith.constant 0 : index
    %147 = vector.load %arg8[%c0_69, %c0_70, %c0_71] : memref<2x1x64xf32, #tpu.memory_space<vmem>>, vector<1x1x64xf32>
    %148 = vector.shape_cast %147 : vector<1x1x64xf32> to vector<1x64xf32>
    %149 = vector.broadcast %148 : vector<1x64xf32> to vector<16x64xf32>
    %150 = arith.addf %146, %149 : vector<16x64xf32>
    %cst_72 = arith.constant 0.000000e+00 : f32
    %151 = vector.broadcast %cst_72 : f32 to vector<16x64xf32>
    %152 = arith.maximumf %150, %151 : vector<16x64xf32>
    %c0_73 = arith.constant 0 : index
    %c0_74 = arith.constant 0 : index
    %c0_75 = arith.constant 0 : index
    %153 = vector.load %arg9[%c0_73, %c0_74, %c0_75] : memref<2x64x32xf32, #tpu.memory_space<vmem>>, vector<1x64x32xf32>
    %154 = vector.shape_cast %153 : vector<1x64x32xf32> to vector<64x32xf32>
    %cst_76 = arith.constant dense<0.000000e+00> : vector<16x32xf32>
    %155 = tpu.matmul %152, %154, %cst_76 {dimension_numbers = #tpu.dot_dimension_numbers<[1], [0], [0], [1], [0, 0, 1, 1], [], []>} : vector<16x64xf32>, vector<64x32xf32>, vector<16x32xf32> -> vector<16x32xf32>
    %c0_77 = arith.constant 0 : index
    %c0_78 = arith.constant 0 : index
    %c0_79 = arith.constant 0 : index
    %156 = vector.load %arg10[%c0_77, %c0_78, %c0_79] : memref<2x1x32xf32, #tpu.memory_space<vmem>>, vector<1x1x32xf32>
    %157 = vector.shape_cast %156 : vector<1x1x32xf32> to vector<1x32xf32>
    %158 = vector.broadcast %157 : vector<1x32xf32> to vector<16x32xf32>
    %159 = arith.addf %155, %158 : vector<16x32xf32>
    %160 = arith.addf %119, %159 : vector<16x32xf32>
    %c1 = arith.constant 1 : index
    %c0_80 = arith.constant 0 : index
    %c0_81 = arith.constant 0 : index
    %161 = vector.load %arg11[%c1, %c0_80, %c0_81] : memref<2x1x32xf32, #tpu.memory_space<vmem>>, vector<1x1x32xf32>
    %162 = vector.shape_cast %161 : vector<1x1x32xf32> to vector<1x32xf32>
    %c1_82 = arith.constant 1 : index
    %c0_83 = arith.constant 0 : index
    %c0_84 = arith.constant 0 : index
    %163 = vector.load %arg12[%c1_82, %c0_83, %c0_84] : memref<2x1x32xf32, #tpu.memory_space<vmem>>, vector<1x1x32xf32>
    %164 = vector.shape_cast %163 : vector<1x1x32xf32> to vector<1x32xf32>
    %cst_85 = arith.constant dense<0.000000e+00> : vector<16xf32>
    %165 = vector.multi_reduction <add>, %160, %cst_85 [1] : vector<16x32xf32> to vector<16xf32>
    %166 = vector.shape_cast %165 : vector<16xf32> to vector<16x1xf32>
    %cst_86 = arith.constant 3.200000e+01 : f32
    %167 = vector.broadcast %cst_86 : f32 to vector<16x1xf32>
    %168 = arith.divf %166, %167 : vector<16x1xf32>
    %169 = vector.broadcast %168 : vector<16x1xf32> to vector<16x32xf32>
    %170 = arith.subf %160, %169 : vector<16x32xf32>
    %171 = arith.mulf %170, %170 : vector<16x32xf32>
    %cst_87 = arith.constant dense<0.000000e+00> : vector<16xf32>
    %172 = vector.multi_reduction <add>, %171, %cst_87 [1] : vector<16x32xf32> to vector<16xf32>
    %173 = vector.shape_cast %172 : vector<16xf32> to vector<16x1xf32>
    %cst_88 = arith.constant 3.100000e+01 : f32
    %174 = vector.broadcast %cst_88 : f32 to vector<16x1xf32>
    %175 = arith.divf %173, %174 : vector<16x1xf32>
    %176 = vector.broadcast %162 : vector<1x32xf32> to vector<16x32xf32>
    %177 = arith.mulf %176, %170 : vector<16x32xf32>
    %178 = math.sqrt %175 : vector<16x1xf32>
    %cst_89 = arith.constant 9.99999997E-7 : f32
    %179 = vector.broadcast %cst_89 : f32 to vector<16x1xf32>
    %180 = arith.addf %178, %179 : vector<16x1xf32>
    %181 = vector.broadcast %180 : vector<16x1xf32> to vector<16x32xf32>
    %182 = arith.divf %177, %181 : vector<16x32xf32>
    %183 = vector.broadcast %164 : vector<1x32xf32> to vector<16x32xf32>
    %184 = arith.addf %182, %183 : vector<16x32xf32>
    %c1_90 = arith.constant 1 : index
    %c0_91 = arith.constant 0 : index
    %c0_92 = arith.constant 0 : index
    %185 = vector.load %arg3[%c1_90, %c0_91, %c0_92] : memref<2x32x96xf32, #tpu.memory_space<vmem>>, vector<1x32x96xf32>
    %186 = vector.shape_cast %185 : vector<1x32x96xf32> to vector<32x96xf32>
    %cst_93 = arith.constant dense<0.000000e+00> : vector<16x96xf32>
    %187 = tpu.matmul %184, %186, %cst_93 {dimension_numbers = #tpu.dot_dimension_numbers<[1], [0], [0], [1], [0, 0, 1, 1], [], []>} : vector<16x32xf32>, vector<32x96xf32>, vector<16x96xf32> -> vector<16x96xf32>
    %c1_94 = arith.constant 1 : index
    %c0_95 = arith.constant 0 : index
    %c0_96 = arith.constant 0 : index
    %188 = vector.load %arg4[%c1_94, %c0_95, %c0_96] : memref<2x1x96xf32, #tpu.memory_space<vmem>>, vector<1x1x96xf32>
    %189 = vector.shape_cast %188 : vector<1x1x96xf32> to vector<1x96xf32>
    %190 = vector.broadcast %189 : vector<1x96xf32> to vector<16x96xf32>
    %191 = arith.addf %187, %190 : vector<16x96xf32>
    %192 = vector.extract_strided_slice %191 {offsets = [0, 0], sizes = [16, 8], strides = [1, 1]} : vector<16x96xf32> to vector<16x8xf32>
    %193 = vector.extract_strided_slice %191 {offsets = [0, 32], sizes = [16, 8], strides = [1, 1]} : vector<16x96xf32> to vector<16x8xf32>
    %194 = vector.extract_strided_slice %191 {offsets = [0, 64], sizes = [16, 8], strides = [1, 1]} : vector<16x96xf32> to vector<16x8xf32>
    %cst_97 = arith.constant dense<0.000000e+00> : vector<16x16xf32>
    %195 = tpu.matmul %192, %193, %cst_97 {dimension_numbers = #tpu.dot_dimension_numbers<[1], [1], [0], [0], [0, 0, 1, 0], [], []>} : vector<16x8xf32>, vector<16x8xf32>, vector<16x16xf32> -> vector<16x16xf32>
    %cst_98 = arith.constant 0.353553385 : f32
    %196 = vector.broadcast %cst_98 : f32 to vector<16x16xf32>
    %197 = arith.mulf %195, %196 : vector<16x16xf32>
    %cst_99 = arith.constant -1.000000e+09 : f32
    %198 = vector.broadcast %cst_99 : f32 to vector<16x16xf32>
    %199 = arith.select %7, %197, %198 : vector<16x16xi1>, vector<16x16xf32>
    %cst_100 = arith.constant dense<0xFF800000> : vector<16xf32>
    %200 = vector.multi_reduction <maximumf>, %199, %cst_100 [1] : vector<16x16xf32> to vector<16xf32>
    %201 = vector.shape_cast %200 : vector<16xf32> to vector<16x1xf32>
    %202 = vector.broadcast %201 : vector<16x1xf32> to vector<16x16xf32>
    %203 = arith.subf %199, %202 : vector<16x16xf32>
    %204 = math.exp %203 : vector<16x16xf32>
    %cst_101 = arith.constant dense<0.000000e+00> : vector<16xf32>
    %205 = vector.multi_reduction <add>, %204, %cst_101 [1] : vector<16x16xf32> to vector<16xf32>
    %206 = vector.shape_cast %205 : vector<16xf32> to vector<16x1xf32>
    %207 = vector.broadcast %206 : vector<16x1xf32> to vector<16x16xf32>
    %208 = arith.divf %204, %207 : vector<16x16xf32>
    %cst_102 = arith.constant dense<0.000000e+00> : vector<16x8xf32>
    %209 = tpu.matmul %208, %194, %cst_102 {dimension_numbers = #tpu.dot_dimension_numbers<[1], [0], [0], [1], [0, 0, 1, 1], [], []>} : vector<16x16xf32>, vector<16x8xf32>, vector<16x8xf32> -> vector<16x8xf32>
    %210 = vector.extract_strided_slice %191 {offsets = [0, 8], sizes = [16, 8], strides = [1, 1]} : vector<16x96xf32> to vector<16x8xf32>
    %211 = vector.extract_strided_slice %191 {offsets = [0, 40], sizes = [16, 8], strides = [1, 1]} : vector<16x96xf32> to vector<16x8xf32>
    %212 = vector.extract_strided_slice %191 {offsets = [0, 72], sizes = [16, 8], strides = [1, 1]} : vector<16x96xf32> to vector<16x8xf32>
    %cst_103 = arith.constant dense<0.000000e+00> : vector<16x16xf32>
    %213 = tpu.matmul %210, %211, %cst_103 {dimension_numbers = #tpu.dot_dimension_numbers<[1], [1], [0], [0], [0, 0, 1, 0], [], []>} : vector<16x8xf32>, vector<16x8xf32>, vector<16x16xf32> -> vector<16x16xf32>
    %cst_104 = arith.constant 0.353553385 : f32
    %214 = vector.broadcast %cst_104 : f32 to vector<16x16xf32>
    %215 = arith.mulf %213, %214 : vector<16x16xf32>
    %cst_105 = arith.constant -1.000000e+09 : f32
    %216 = vector.broadcast %cst_105 : f32 to vector<16x16xf32>
    %217 = arith.select %7, %215, %216 : vector<16x16xi1>, vector<16x16xf32>
    %cst_106 = arith.constant dense<0xFF800000> : vector<16xf32>
    %218 = vector.multi_reduction <maximumf>, %217, %cst_106 [1] : vector<16x16xf32> to vector<16xf32>
    %219 = vector.shape_cast %218 : vector<16xf32> to vector<16x1xf32>
    %220 = vector.broadcast %219 : vector<16x1xf32> to vector<16x16xf32>
    %221 = arith.subf %217, %220 : vector<16x16xf32>
    %222 = math.exp %221 : vector<16x16xf32>
    %cst_107 = arith.constant dense<0.000000e+00> : vector<16xf32>
    %223 = vector.multi_reduction <add>, %222, %cst_107 [1] : vector<16x16xf32> to vector<16xf32>
    %224 = vector.shape_cast %223 : vector<16xf32> to vector<16x1xf32>
    %225 = vector.broadcast %224 : vector<16x1xf32> to vector<16x16xf32>
    %226 = arith.divf %222, %225 : vector<16x16xf32>
    %cst_108 = arith.constant dense<0.000000e+00> : vector<16x8xf32>
    %227 = tpu.matmul %226, %212, %cst_108 {dimension_numbers = #tpu.dot_dimension_numbers<[1], [0], [0], [1], [0, 0, 1, 1], [], []>} : vector<16x16xf32>, vector<16x8xf32>, vector<16x8xf32> -> vector<16x8xf32>
    %228 = vector.extract_strided_slice %191 {offsets = [0, 16], sizes = [16, 8], strides = [1, 1]} : vector<16x96xf32> to vector<16x8xf32>
    %229 = vector.extract_strided_slice %191 {offsets = [0, 48], sizes = [16, 8], strides = [1, 1]} : vector<16x96xf32> to vector<16x8xf32>
    %230 = vector.extract_strided_slice %191 {offsets = [0, 80], sizes = [16, 8], strides = [1, 1]} : vector<16x96xf32> to vector<16x8xf32>
    %cst_109 = arith.constant dense<0.000000e+00> : vector<16x16xf32>
    %231 = tpu.matmul %228, %229, %cst_109 {dimension_numbers = #tpu.dot_dimension_numbers<[1], [1], [0], [0], [0, 0, 1, 0], [], []>} : vector<16x8xf32>, vector<16x8xf32>, vector<16x16xf32> -> vector<16x16xf32>
    %cst_110 = arith.constant 0.353553385 : f32
    %232 = vector.broadcast %cst_110 : f32 to vector<16x16xf32>
    %233 = arith.mulf %231, %232 : vector<16x16xf32>
    %cst_111 = arith.constant -1.000000e+09 : f32
    %234 = vector.broadcast %cst_111 : f32 to vector<16x16xf32>
    %235 = arith.select %7, %233, %234 : vector<16x16xi1>, vector<16x16xf32>
    %cst_112 = arith.constant dense<0xFF800000> : vector<16xf32>
    %236 = vector.multi_reduction <maximumf>, %235, %cst_112 [1] : vector<16x16xf32> to vector<16xf32>
    %237 = vector.shape_cast %236 : vector<16xf32> to vector<16x1xf32>
    %238 = vector.broadcast %237 : vector<16x1xf32> to vector<16x16xf32>
    %239 = arith.subf %235, %238 : vector<16x16xf32>
    %240 = math.exp %239 : vector<16x16xf32>
    %cst_113 = arith.constant dense<0.000000e+00> : vector<16xf32>
    %241 = vector.multi_reduction <add>, %240, %cst_113 [1] : vector<16x16xf32> to vector<16xf32>
    %242 = vector.shape_cast %241 : vector<16xf32> to vector<16x1xf32>
    %243 = vector.broadcast %242 : vector<16x1xf32> to vector<16x16xf32>
    %244 = arith.divf %240, %243 : vector<16x16xf32>
    %cst_114 = arith.constant dense<0.000000e+00> : vector<16x8xf32>
    %245 = tpu.matmul %244, %230, %cst_114 {dimension_numbers = #tpu.dot_dimension_numbers<[1], [0], [0], [1], [0, 0, 1, 1], [], []>} : vector<16x16xf32>, vector<16x8xf32>, vector<16x8xf32> -> vector<16x8xf32>
    %246 = vector.extract_strided_slice %191 {offsets = [0, 24], sizes = [16, 8], strides = [1, 1]} : vector<16x96xf32> to vector<16x8xf32>
    %247 = vector.extract_strided_slice %191 {offsets = [0, 56], sizes = [16, 8], strides = [1, 1]} : vector<16x96xf32> to vector<16x8xf32>
    %248 = vector.extract_strided_slice %191 {offsets = [0, 88], sizes = [16, 8], strides = [1, 1]} : vector<16x96xf32> to vector<16x8xf32>
    %cst_115 = arith.constant dense<0.000000e+00> : vector<16x16xf32>
    %249 = tpu.matmul %246, %247, %cst_115 {dimension_numbers = #tpu.dot_dimension_numbers<[1], [1], [0], [0], [0, 0, 1, 0], [], []>} : vector<16x8xf32>, vector<16x8xf32>, vector<16x16xf32> -> vector<16x16xf32>
    %cst_116 = arith.constant 0.353553385 : f32
    %250 = vector.broadcast %cst_116 : f32 to vector<16x16xf32>
    %251 = arith.mulf %249, %250 : vector<16x16xf32>
    %cst_117 = arith.constant -1.000000e+09 : f32
    %252 = vector.broadcast %cst_117 : f32 to vector<16x16xf32>
    %253 = arith.select %7, %251, %252 : vector<16x16xi1>, vector<16x16xf32>
    %cst_118 = arith.constant dense<0xFF800000> : vector<16xf32>
    %254 = vector.multi_reduction <maximumf>, %253, %cst_118 [1] : vector<16x16xf32> to vector<16xf32>
    %255 = vector.shape_cast %254 : vector<16xf32> to vector<16x1xf32>
    %256 = vector.broadcast %255 : vector<16x1xf32> to vector<16x16xf32>
    %257 = arith.subf %253, %256 : vector<16x16xf32>
    %258 = math.exp %257 : vector<16x16xf32>
    %cst_119 = arith.constant dense<0.000000e+00> : vector<16xf32>
    %259 = vector.multi_reduction <add>, %258, %cst_119 [1] : vector<16x16xf32> to vector<16xf32>
    %260 = vector.shape_cast %259 : vector<16xf32> to vector<16x1xf32>
    %261 = vector.broadcast %260 : vector<16x1xf32> to vector<16x16xf32>
    %262 = arith.divf %258, %261 : vector<16x16xf32>
    %cst_120 = arith.constant dense<0.000000e+00> : vector<16x8xf32>
    %263 = tpu.matmul %262, %248, %cst_120 {dimension_numbers = #tpu.dot_dimension_numbers<[1], [0], [0], [1], [0, 0, 1, 1], [], []>} : vector<16x16xf32>, vector<16x8xf32>, vector<16x8xf32> -> vector<16x8xf32>
    %264 = tpu.concatenate %209, %227, %245, %263 in 1 : vector<16x8xf32>, vector<16x8xf32>, vector<16x8xf32>, vector<16x8xf32> -> vector<16x32xf32>
    %c1_121 = arith.constant 1 : index
    %c0_122 = arith.constant 0 : index
    %c0_123 = arith.constant 0 : index
    %265 = vector.load %arg5[%c1_121, %c0_122, %c0_123] : memref<2x32x32xf32, #tpu.memory_space<vmem>>, vector<1x32x32xf32>
    %266 = vector.shape_cast %265 : vector<1x32x32xf32> to vector<32x32xf32>
    %cst_124 = arith.constant dense<0.000000e+00> : vector<16x32xf32>
    %267 = tpu.matmul %264, %266, %cst_124 {dimension_numbers = #tpu.dot_dimension_numbers<[1], [0], [0], [1], [0, 0, 1, 1], [], []>} : vector<16x32xf32>, vector<32x32xf32>, vector<16x32xf32> -> vector<16x32xf32>
    %c1_125 = arith.constant 1 : index
    %c0_126 = arith.constant 0 : index
    %c0_127 = arith.constant 0 : index
    %268 = vector.load %arg6[%c1_125, %c0_126, %c0_127] : memref<2x1x32xf32, #tpu.memory_space<vmem>>, vector<1x1x32xf32>
    %269 = vector.shape_cast %268 : vector<1x1x32xf32> to vector<1x32xf32>
    %270 = vector.broadcast %269 : vector<1x32xf32> to vector<16x32xf32>
    %271 = arith.addf %267, %270 : vector<16x32xf32>
    %272 = arith.addf %160, %271 : vector<16x32xf32>
    %c1_128 = arith.constant 1 : index
    %c0_129 = arith.constant 0 : index
    %c0_130 = arith.constant 0 : index
    %273 = vector.load %arg13[%c1_128, %c0_129, %c0_130] : memref<2x1x32xf32, #tpu.memory_space<vmem>>, vector<1x1x32xf32>
    %274 = vector.shape_cast %273 : vector<1x1x32xf32> to vector<1x32xf32>
    %c1_131 = arith.constant 1 : index
    %c0_132 = arith.constant 0 : index
    %c0_133 = arith.constant 0 : index
    %275 = vector.load %arg14[%c1_131, %c0_132, %c0_133] : memref<2x1x32xf32, #tpu.memory_space<vmem>>, vector<1x1x32xf32>
    %276 = vector.shape_cast %275 : vector<1x1x32xf32> to vector<1x32xf32>
    %cst_134 = arith.constant dense<0.000000e+00> : vector<16xf32>
    %277 = vector.multi_reduction <add>, %272, %cst_134 [1] : vector<16x32xf32> to vector<16xf32>
    %278 = vector.shape_cast %277 : vector<16xf32> to vector<16x1xf32>
    %cst_135 = arith.constant 3.200000e+01 : f32
    %279 = vector.broadcast %cst_135 : f32 to vector<16x1xf32>
    %280 = arith.divf %278, %279 : vector<16x1xf32>
    %281 = vector.broadcast %280 : vector<16x1xf32> to vector<16x32xf32>
    %282 = arith.subf %272, %281 : vector<16x32xf32>
    %283 = arith.mulf %282, %282 : vector<16x32xf32>
    %cst_136 = arith.constant dense<0.000000e+00> : vector<16xf32>
    %284 = vector.multi_reduction <add>, %283, %cst_136 [1] : vector<16x32xf32> to vector<16xf32>
    %285 = vector.shape_cast %284 : vector<16xf32> to vector<16x1xf32>
    %cst_137 = arith.constant 3.100000e+01 : f32
    %286 = vector.broadcast %cst_137 : f32 to vector<16x1xf32>
    %287 = arith.divf %285, %286 : vector<16x1xf32>
    %288 = vector.broadcast %274 : vector<1x32xf32> to vector<16x32xf32>
    %289 = arith.mulf %288, %282 : vector<16x32xf32>
    %290 = math.sqrt %287 : vector<16x1xf32>
    %cst_138 = arith.constant 9.99999997E-7 : f32
    %291 = vector.broadcast %cst_138 : f32 to vector<16x1xf32>
    %292 = arith.addf %290, %291 : vector<16x1xf32>
    %293 = vector.broadcast %292 : vector<16x1xf32> to vector<16x32xf32>
    %294 = arith.divf %289, %293 : vector<16x32xf32>
    %295 = vector.broadcast %276 : vector<1x32xf32> to vector<16x32xf32>
    %296 = arith.addf %294, %295 : vector<16x32xf32>
    %c1_139 = arith.constant 1 : index
    %c0_140 = arith.constant 0 : index
    %c0_141 = arith.constant 0 : index
    %297 = vector.load %arg7[%c1_139, %c0_140, %c0_141] : memref<2x32x64xf32, #tpu.memory_space<vmem>>, vector<1x32x64xf32>
    %298 = vector.shape_cast %297 : vector<1x32x64xf32> to vector<32x64xf32>
    %cst_142 = arith.constant dense<0.000000e+00> : vector<16x64xf32>
    %299 = tpu.matmul %296, %298, %cst_142 {dimension_numbers = #tpu.dot_dimension_numbers<[1], [0], [0], [1], [0, 0, 1, 1], [], []>} : vector<16x32xf32>, vector<32x64xf32>, vector<16x64xf32> -> vector<16x64xf32>
    %c1_143 = arith.constant 1 : index
    %c0_144 = arith.constant 0 : index
    %c0_145 = arith.constant 0 : index
    %300 = vector.load %arg8[%c1_143, %c0_144, %c0_145] : memref<2x1x64xf32, #tpu.memory_space<vmem>>, vector<1x1x64xf32>
    %301 = vector.shape_cast %300 : vector<1x1x64xf32> to vector<1x64xf32>
    %302 = vector.broadcast %301 : vector<1x64xf32> to vector<16x64xf32>
    %303 = arith.addf %299, %302 : vector<16x64xf32>
    %cst_146 = arith.constant 0.000000e+00 : f32
    %304 = vector.broadcast %cst_146 : f32 to vector<16x64xf32>
    %305 = arith.maximumf %303, %304 : vector<16x64xf32>
    %c1_147 = arith.constant 1 : index
    %c0_148 = arith.constant 0 : index
    %c0_149 = arith.constant 0 : index
    %306 = vector.load %arg9[%c1_147, %c0_148, %c0_149] : memref<2x64x32xf32, #tpu.memory_space<vmem>>, vector<1x64x32xf32>
    %307 = vector.shape_cast %306 : vector<1x64x32xf32> to vector<64x32xf32>
    %cst_150 = arith.constant dense<0.000000e+00> : vector<16x32xf32>
    %308 = tpu.matmul %305, %307, %cst_150 {dimension_numbers = #tpu.dot_dimension_numbers<[1], [0], [0], [1], [0, 0, 1, 1], [], []>} : vector<16x64xf32>, vector<64x32xf32>, vector<16x32xf32> -> vector<16x32xf32>
    %c1_151 = arith.constant 1 : index
    %c0_152 = arith.constant 0 : index
    %c0_153 = arith.constant 0 : index
    %309 = vector.load %arg10[%c1_151, %c0_152, %c0_153] : memref<2x1x32xf32, #tpu.memory_space<vmem>>, vector<1x1x32xf32>
    %310 = vector.shape_cast %309 : vector<1x1x32xf32> to vector<1x32xf32>
    %311 = vector.broadcast %310 : vector<1x32xf32> to vector<16x32xf32>
    %312 = arith.addf %308, %311 : vector<16x32xf32>
    %313 = arith.addf %272, %312 : vector<16x32xf32>
    %c0_154 = arith.constant 0 : index
    %c0_155 = arith.constant 0 : index
    %c0_156 = arith.constant 0 : index
    %314 = vector.load %arg15[%c0_154, %c0_155, %c0_156] : memref<1x16x32xf32, #tpu.memory_space<vmem>>, vector<1x16x32xf32>
    %315 = vector.shape_cast %314 : vector<1x16x32xf32> to vector<16x32xf32>
    %316 = vector.shape_cast %313 : vector<16x32xf32> to vector<1x16x32xf32>
    tpu.vector_store %arg15[%c0_154, %c0_155, %c0_156], %316 {strides = array<i32>} : memref<1x16x32xf32, #tpu.memory_space<vmem>>, vector<1x16x32xf32>,
    return
  }
  func.func @transform_0(%arg0: i32) -> (i32, i32, i32) {
    %c0_i32 = arith.constant 0 : i32
    %c0_i32_0 = arith.constant 0 : i32
    %c0_i32_1 = arith.constant 0 : i32
    return %arg0, %c0_i32, %c0_i32_0 : i32, i32, i32
  }
  func.func @transform_1(%arg0: i32) -> (i32, i32, i32) {
    %c0_i32 = arith.constant 0 : i32
    %c0_i32_0 = arith.constant 0 : i32
    %c0_i32_1 = arith.constant 0 : i32
    return %arg0, %c0_i32, %c0_i32_0 : i32, i32, i32
  }
  func.func @transform_2(%arg0: i32) -> (i32, i32, i32) {
    %c0_i32 = arith.constant 0 : i32
    %c0_i32_0 = arith.constant 0 : i32
    %c0_i32_1 = arith.constant 0 : i32
    %c0_i32_2 = arith.constant 0 : i32
    return %c0_i32, %c0_i32_0, %c0_i32_1 : i32, i32, i32
  }
  func.func @transform_3(%arg0: i32) -> (i32, i32, i32) {
    %c0_i32 = arith.constant 0 : i32
    %c0_i32_0 = arith.constant 0 : i32
    %c0_i32_1 = arith.constant 0 : i32
    %c0_i32_2 = arith.constant 0 : i32
    return %c0_i32, %c0_i32_0, %c0_i32_1 : i32, i32, i32
  }
  func.func @transform_4(%arg0: i32) -> (i32, i32, i32) {
    %c0_i32 = arith.constant 0 : i32
    %c0_i32_0 = arith.constant 0 : i32
    %c0_i32_1 = arith.constant 0 : i32
    %c0_i32_2 = arith.constant 0 : i32
    return %c0_i32, %c0_i32_0, %c0_i32_1 : i32, i32, i32
  }
  func.func @transform_5(%arg0: i32) -> (i32, i32, i32) {
    %c0_i32 = arith.constant 0 : i32
    %c0_i32_0 = arith.constant 0 : i32
    %c0_i32_1 = arith.constant 0 : i32
    %c0_i32_2 = arith.constant 0 : i32
    return %c0_i32, %c0_i32_0, %c0_i32_1 : i32, i32, i32
  }
  func.func @transform_6(%arg0: i32) -> (i32, i32, i32) {
    %c0_i32 = arith.constant 0 : i32
    %c0_i32_0 = arith.constant 0 : i32
    %c0_i32_1 = arith.constant 0 : i32
    %c0_i32_2 = arith.constant 0 : i32
    return %c0_i32, %c0_i32_0, %c0_i32_1 : i32, i32, i32
  }
  func.func @transform_7(%arg0: i32) -> (i32, i32, i32) {
    %c0_i32 = arith.constant 0 : i32
    %c0_i32_0 = arith.constant 0 : i32
    %c0_i32_1 = arith.constant 0 : i32
    %c0_i32_2 = arith.constant 0 : i32
    return %c0_i32, %c0_i32_0, %c0_i32_1 : i32, i32, i32
  }
  func.func @transform_8(%arg0: i32) -> (i32, i32, i32) {
    %c0_i32 = arith.constant 0 : i32
    %c0_i32_0 = arith.constant 0 : i32
    %c0_i32_1 = arith.constant 0 : i32
    %c0_i32_2 = arith.constant 0 : i32
    return %c0_i32, %c0_i32_0, %c0_i32_1 : i32, i32, i32
  }
  func.func @transform_9(%arg0: i32) -> (i32, i32, i32) {
    %c0_i32 = arith.constant 0 : i32
    %c0_i32_0 = arith.constant 0 : i32
    %c0_i32_1 = arith.constant 0 : i32
    %c0_i32_2 = arith.constant 0 : i32
    return %c0_i32, %c0_i32_0, %c0_i32_1 : i32, i32, i32
  }
  func.func @transform_10(%arg0: i32) -> (i32, i32, i32) {
    %c0_i32 = arith.constant 0 : i32
    %c0_i32_0 = arith.constant 0 : i32
    %c0_i32_1 = arith.constant 0 : i32
    %c0_i32_2 = arith.constant 0 : i32
    return %c0_i32, %c0_i32_0, %c0_i32_1 : i32, i32, i32
  }
  func.func @transform_11(%arg0: i32) -> (i32, i32, i32) {
    %c0_i32 = arith.constant 0 : i32
    %c0_i32_0 = arith.constant 0 : i32
    %c0_i32_1 = arith.constant 0 : i32
    %c0_i32_2 = arith.constant 0 : i32
    return %c0_i32, %c0_i32_0, %c0_i32_1 : i32, i32, i32
  }
  func.func @transform_12(%arg0: i32) -> (i32, i32, i32) {
    %c0_i32 = arith.constant 0 : i32
    %c0_i32_0 = arith.constant 0 : i32
    %c0_i32_1 = arith.constant 0 : i32
    %c0_i32_2 = arith.constant 0 : i32
    return %c0_i32, %c0_i32_0, %c0_i32_1 : i32, i32, i32
  }
  func.func @transform_13(%arg0: i32) -> (i32, i32, i32) {
    %c0_i32 = arith.constant 0 : i32
    %c0_i32_0 = arith.constant 0 : i32
    %c0_i32_1 = arith.constant 0 : i32
    %c0_i32_2 = arith.constant 0 : i32
    return %c0_i32, %c0_i32_0, %c0_i32_1 : i32, i32, i32
  }
  func.func @transform_14(%arg0: i32) -> (i32, i32, i32) {
    %c0_i32 = arith.constant 0 : i32
    %c0_i32_0 = arith.constant 0 : i32
    %c0_i32_1 = arith.constant 0 : i32
    return %arg0, %c0_i32, %c0_i32_0 : i32, i32, i32
  }
}

</mosaic_0001>

<llo_original>
// kernel: encoder_forward.1
$region0: #{encoder_forward.1}
  #allocation0 [shape = 'u32[]', space=smem, size = 0x4, offset = 0x4, fixed_abs, tag = 'smem constant byte address 0x4 - core index']
  #allocation1 [shape = 'u32[72,128]{1,0:T(1,128)}', space=vmem, size = 0x9000, scoped, tag = 'internal scratch']
  %s0 = inlined_call_operand.hbm [shape: f32[2,16,32], index: 0, kind: input, shape index: {}]
  %s1 = inlined_call_operand.vmem [shape: f32[2,1,16], index: 1, kind: input, shape index: {}]
  %s2 = inlined_call_operand.vmem [shape: f32[2,32,96], index: 2, kind: input, shape index: {}]
  %s3 = inlined_call_operand.hbm [shape: f32[2,1,96], index: 3, kind: input, shape index: {}]
  %s4 = inlined_call_operand.vmem [shape: f32[2,32,32], index: 4, kind: input, shape index: {}]
  %s5 = inlined_call_operand.hbm [shape: f32[2,1,32], index: 5, kind: input, shape index: {}]
  %s6 = inlined_call_operand.vmem [shape: f32[2,32,64], index: 6, kind: input, shape index: {}]
  %s7 = inlined_call_operand.hbm [shape: f32[2,1,64], index: 7, kind: input, shape index: {}]
  %s8 = inlined_call_operand.vmem [shape: f32[2,64,32], index: 8, kind: input, shape index: {}]
  %s9 = inlined_call_operand.hbm [shape: f32[2,1,32], index: 9, kind: input, shape index: {}]
  %s10 = inlined_call_operand.hbm [shape: f32[2,1,32], index: 10, kind: input, shape index: {}]
  %s11 = inlined_call_operand.hbm [shape: f32[2,1,32], index: 11, kind: input, shape index: {}]
  %s12 = inlined_call_operand.vmem [shape: f32[2,1,32], index: 12, kind: input, shape index: {}]
  %s13 = inlined_call_operand.hbm [shape: f32[2,1,32], index: 13, kind: input, shape index: {}]
  %s14 = inlined_call_operand.hbm [shape: f32[2,16,32], index: 14, kind: output, shape index: {}]
  %s15 = sld [smem:[#allocation0]]
  $region121: #{encoder_forward.1} parent=0
    _
  %s17 = ssub.s32 1, %s15
  %s18 = scalar_select 0, %s17, %s15
  $region1: #{encoder_forward.1} parent=0
    #allocation2 [shape = 'u8[16384]{0}', space=vmem, size = 0x4000, scoped, tag = 'input window, operand 0']
    #allocation3 [shape = 's32[2]{0}', space=sflag, size = 0x8, scoped, tag = 'scoped memory for encoder_forward.1']
    #allocation4 [shape = 's32[2]{0}', space=sflag, size = 0x8, scoped, tag = 'scoped memory for encoder_forward.1']
    #allocation5 [shape = 'u8[1024]{0}', space=vmem, size = 0x400, scoped, tag = 'input window, operand 3, single buffered']
    #allocation6 [shape = 's32[1]{0}', space=sflag, size = 0x4, scoped, tag = 'scoped memory for encoder_forward.1']
    #allocation7 [shape = 'u8[1024]{0}', space=vmem, size = 0x400, scoped, tag = 'input window, operand 5, single buffered']
    #allocation8 [shape = 'u8[1024]{0}', space=vmem, size = 0x400, scoped, tag = 'input window, operand 7, single buffered']
    #allocation9 [shape = 's32[1]{0}', space=sflag, size = 0x4, scoped, tag = 'scoped memory for encoder_forward.1']
    #allocation10 [shape = 'u8[1024]{0}', space=vmem, size = 0x400, scoped, tag = 'input window, operand 9, single buffered']
    #allocation11 [shape = 'u8[1024]{0}', space=vmem, size = 0x400, scoped, tag = 'input window, operand 10, single buffered']
    #allocation12 [shape = 's32[1]{0}', space=sflag, size = 0x4, scoped, tag = 'scoped memory for encoder_forward.1']
    #allocation13 [shape = 'u8[1024]{0}', space=vmem, size = 0x400, scoped, tag = 'input window, operand 11, single buffered']
    #allocation14 [shape = 'u8[1024]{0}', space=vmem, size = 0x400, scoped, tag = 'input window, operand 13, single buffered']
    #allocation15 [shape = 's32[1]{0}', space=sflag, size = 0x4, scoped, tag = 'scoped memory for encoder_forward.1']
    #allocation16 [shape = 'u8[16384]{0}', space=vmem, size = 0x4000, scoped, tag = 'output window, operand 0']
    %19 = vsyncpa [#allocation3], 0
    %s20 = scalar_lea.sflag [#allocation3], 1
    %21 = vsyncpa %s20, 0
    %22 = vsyncpa [#allocation6], 0
    %23 = vsyncpa [#allocation9], 0
    %24 = vsyncpa [#allocation12], 0
    %25 = vsyncpa [#allocation15], 0
    %26 = vsyncpa [#allocation4], 0
    %s27 = scalar_lea.sflag [#allocation4], 1
    %28 = vsyncpa %s27, 0
    loop: start=0, step=1, limit=4
    $region2: #{encoder_forward.1} parent=1 // loop_pre_header
      _
    $region3: #{encoder_forward.1} parent=1 // loop_header
      %s30 = sphi 0, %s34
      %p31 = scmp.ge.s32.totalorder %s30, 4
      %s40 = sphi 0, %s42
      %s43 = sphi 0, %s40
      %s44 = sphi 0, %s43
      %s60 = sphi 0, %s44
      %s66 = sphi 0, %s68
      %s69 = sphi 0, %s66
      %s70 = sphi 0, %s69
      %s86 = sphi 0, %s70
      %s90 = sphi 0, %s90
      %s92 = sphi 0, %s90
      %s93 = sphi 0, %s92
      %s107 = sphi 0, %s93
      %s111 = sphi 0, %s111
      %s113 = sphi 0, %s111
      %s114 = sphi 0, %s113
      %s128 = sphi 0, %s114
      %s132 = sphi 0, %s132
      %s134 = sphi 0, %s132
      %s135 = sphi 0, %s134
      %s149 = sphi 0, %s135
      %s153 = sphi 0, %s153
      %s155 = sphi 0, %s153
      %s156 = sphi 0, %s155
      %s170 = sphi 0, %s156
      %s174 = sphi 0, %s174
      %s176 = sphi 0, %s174
      %s177 = sphi 0, %s176
      %s191 = sphi 0, %s177
      %s195 = sphi 0, %s195
      %s197 = sphi 0, %s195
      %s198 = sphi 0, %s197
      %s212 = sphi 0, %s198
      %s216 = sphi 0, %s216
      %s218 = sphi 0, %s216
      %s219 = sphi 0, %s218
      %s233 = sphi 0, %s219
      %s237 = sphi 0, %s237
      %s239 = sphi 0, %s237
      %s240 = sphi 0, %s239
      %s254 = sphi 0, %s240
      %s258 = sphi 0, %s258
      %s260 = sphi 0, %s258
      %s261 = sphi 0, %s260
      %s275 = sphi 0, %s261
      %s279 = sphi 0, %s279
      %s281 = sphi 0, %s279
      %s282 = sphi 0, %s281
      %s296 = sphi 0, %s282
      %s300 = sphi 0, %s300
      %s302 = sphi 0, %s300
      %s303 = sphi 0, %s302
      %s317 = sphi 0, %s303
      %s321 = sphi 0, %s321
      %s323 = sphi 0, %s321
      %s324 = sphi 0, %s323
      %s338 = sphi 0, %s324
      %s344 = sphi 0, %s346
      %s347 = sphi 0, %s344
      %s348 = sphi 0, %s347
      %s364 = sphi 0, %s348
    $region4: #{encoder_forward.1} parent=1 // loop_header_branch
      %33 = sbr.rel (%p31) target = $region8
    $region5: #{encoder_forward.1} parent=1 // loop_body
      %s35 = ssub.s32 %s30, 1
      %s36 = ssub.s32 %s30, 2
      %s37 = sadd.s32 %s30, 1
      %s38 = ssub.s32 %s30, %s37
      %p39 = scmp.eq.s32.totalorder %s38, 0
      %s41 = sadd.s32 %s40, 1
      %s42 = scalar_select %p39, %s40, %s41
      %p45 = pneg %p39
      %p46 = scmp.eq.s32.totalorder %s30, 1
      %p47 = por %p45, %p46
      %p48 = scmp.ne.s32.totalorder %s40, %s43
      %p49 = scmp.eq.s32.totalorder %s30, 0
      %p50 = por %p48, %p49
      %p51 = scmp.ne.s32.totalorder %s40, %s43
      %p52 = scmp.eq.s32.totalorder %s35, 1
      %p53 = por %p51, %p52
      %p54 = scmp.ne.s32.totalorder %s43, %s44
      %p55 = scmp.eq.s32.totalorder %s35, 0
      %p56 = por %p54, %p55
      %p57 = scmp.ne.s32.totalorder %s43, %s44
      %p58 = scmp.eq.s32.totalorder %s36, 1
      %p59 = por %p57, %p58
      %p61 = scmp.ne.s32.totalorder %s44, %s60
      %p62 = scmp.eq.s32.totalorder %s36, 0
      %p63 = por %p61, %p62
      %s64 = ssub.s32 %s30, %s37
      %p65 = scmp.eq.s32.totalorder %s64, 0
      %s67 = sadd.s32 %s66, 1
      %s68 = scalar_select %p65, %s66, %s67
      %p71 = pneg %p65
      %p72 = scmp.eq.s32.totalorder %s30, 1
      %p73 = por %p71, %p72
      %p74 = scmp.ne.s32.totalorder %s66, %s69
      %p75 = scmp.eq.s32.totalorder %s30, 0
      %p76 = por %p74, %p75
      %p77 = scmp.ne.s32.totalorder %s66, %s69
      %p78 = scmp.eq.s32.totalorder %s35, 1
      %p79 = por %p77, %p78
      %p80 = scmp.ne.s32.totalorder %s69, %s70
      %p81 = scmp.eq.s32.totalorder %s35, 0
      %p82 = por %p80, %p81
      %p83 = scmp.ne.s32.totalorder %s69, %s70
      %p84 = scmp.eq.s32.totalorder %s36, 1
      %p85 = por %p83, %p84
      %p87 = scmp.ne.s32.totalorder %s70, %s86
      %p88 = scmp.eq.s32.totalorder %s36, 0
      %p89 = por %p87, %p88
      %s91 = sadd.s32 %s90, 1
      %p94 = scmp.eq.s32.totalorder %s30, 1
      %p95 = scmp.ne.s32.totalorder %s90, %s92
      %p96 = scmp.eq.s32.totalorder %s30, 0
      %p97 = por %p95, %p96
      %p98 = scmp.ne.s32.totalorder %s90, %s92
      %p99 = scmp.eq.s32.totalorder %s35, 1
      %p100 = por %p98, %p99
      %p101 = scmp.ne.s32.totalorder %s92, %s93
      %p102 = scmp.eq.s32.totalorder %s35, 0
      %p103 = por %p101, %p102
      %p104 = scmp.ne.s32.totalorder %s92, %s93
      %p105 = scmp.eq.s32.totalorder %s36, 1
      %p106 = por %p104, %p105
      %p108 = scmp.ne.s32.totalorder %s93, %s107
      %p109 = scmp.eq.s32.totalorder %s36, 0
      %p110 = por %p108, %p109
      %s112 = sadd.s32 %s111, 1
      %p115 = scmp.eq.s32.totalorder %s30, 1
      %p116 = scmp.ne.s32.totalorder %s111, %s113
      %p117 = scmp.eq.s32.totalorder %s30, 0
      %p118 = por %p116, %p117
      %p119 = scmp.ne.s32.totalorder %s111, %s113
      %p120 = scmp.eq.s32.totalorder %s35, 1
      %p121 = por %p119, %p120
      %p122 = scmp.ne.s32.totalorder %s113, %s114
      %p123 = scmp.eq.s32.totalorder %s35, 0
      %p124 = por %p122, %p123
      %p125 = scmp.ne.s32.totalorder %s113, %s114
      %p126 = scmp.eq.s32.totalorder %s36, 1
      %p127 = por %p125, %p126
      %p129 = scmp.ne.s32.totalorder %s114, %s128
      %p130 = scmp.eq.s32.totalorder %s36, 0
      %p131 = por %p129, %p130
      %s133 = sadd.s32 %s132, 1
      %p136 = scmp.eq.s32.totalorder %s30, 1
      %p137 = scmp.ne.s32.totalorder %s132, %s134
      %p138 = scmp.eq.s32.totalorder %s30, 0
      %p139 = por %p137, %p138
      %p140 = scmp.ne.s32.totalorder %s132, %s134
      %p141 = scmp.eq.s32.totalorder %s35, 1
      %p142 = por %p140, %p141
      %p143 = scmp.ne.s32.totalorder %s134, %s135
      %p144 = scmp.eq.s32.totalorder %s35, 0
      %p145 = por %p143, %p144
      %p146 = scmp.ne.s32.totalorder %s134, %s135
      %p147 = scmp.eq.s32.totalorder %s36, 1
      %p148 = por %p146, %p147
      %p150 = scmp.ne.s32.totalorder %s135, %s149
      %p151 = scmp.eq.s32.totalorder %s36, 0
      %p152 = por %p150, %p151
      %s154 = sadd.s32 %s153, 1
      %p157 = scmp.eq.s32.totalorder %s30, 1
      %p158 = scmp.ne.s32.totalorder %s153, %s155
      %p159 = scmp.eq.s32.totalorder %s30, 0
      %p160 = por %p158, %p159
      %p161 = scmp.ne.s32.totalorder %s153, %s155
      %p162 = scmp.eq.s32.totalorder %s35, 1
      %p163 = por %p161, %p162
      %p164 = scmp.ne.s32.totalorder %s155, %s156
      %p165 = scmp.eq.s32.totalorder %s35, 0
      %p166 = por %p164, %p165
      %p167 = scmp.ne.s32.totalorder %s155, %s156
      %p168 = scmp.eq.s32.totalorder %s36, 1
      %p169 = por %p167, %p168
      %p171 = scmp.ne.s32.totalorder %s156, %s170
      %p172 = scmp.eq.s32.totalorder %s36, 0
      %p173 = por %p171, %p172
      %s175 = sadd.s32 %s174, 1
      %p178 = scmp.eq.s32.totalorder %s30, 1
      %p179 = scmp.ne.s32.totalorder %s174, %s176
      %p180 = scmp.eq.s32.totalorder %s30, 0
      %p181 = por %p179, %p180
      %p182 = scmp.ne.s32.totalorder %s174, %s176
      %p183 = scmp.eq.s32.totalorder %s35, 1
      %p184 = por %p182, %p183
      %p185 = scmp.ne.s32.totalorder %s176, %s177
      %p186 = scmp.eq.s32.totalorder %s35, 0
      %p187 = por %p185, %p186
      %p188 = scmp.ne.s32.totalorder %s176, %s177
      %p189 = scmp.eq.s32.totalorder %s36, 1
      %p190 = por %p188, %p189
      %p192 = scmp.ne.s32.totalorder %s177, %s191
      %p193 = scmp.eq.s32.totalorder %s36, 0
      %p194 = por %p192, %p193
      %s196 = sadd.s32 %s195, 1
      %p199 = scmp.eq.s32.totalorder %s30, 1
      %p200 = scmp.ne.s32.totalorder %s195, %s197
      %p201 = scmp.eq.s32.totalorder %s30, 0
      %p202 = por %p200, %p201
      %p203 = scmp.ne.s32.totalorder %s195, %s197
      %p204 = scmp.eq.s32.totalorder %s35, 1
      %p205 = por %p203, %p204
      %p206 = scmp.ne.s32.totalorder %s197, %s198
      %p207 = scmp.eq.s32.totalorder %s35, 0
      %p208 = por %p206, %p207
      %p209 = scmp.ne.s32.totalorder %s197, %s198
      %p210 = scmp.eq.s32.totalorder %s36, 1
      %p211 = por %p209, %p210
      %p213 = scmp.ne.s32.totalorder %s198, %s212
      %p214 = scmp.eq.s32.totalorder %s36, 0
      %p215 = por %p213, %p214
      %s217 = sadd.s32 %s216, 1
      %p220 = scmp.eq.s32.totalorder %s30, 1
      %p221 = scmp.ne.s32.totalorder %s216, %s218
      %p222 = scmp.eq.s32.totalorder %s30, 0
      %p223 = por %p221, %p222
      %p224 = scmp.ne.s32.totalorder %s216, %s218
      %p225 = scmp.eq.s32.totalorder %s35, 1
      %p226 = por %p224, %p225
      %p227 = scmp.ne.s32.totalorder %s218, %s219
      %p228 = scmp.eq.s32.totalorder %s35, 0
      %p229 = por %p227, %p228
      %p230 = scmp.ne.s32.totalorder %s218, %s219
      %p231 = scmp.eq.s32.totalorder %s36, 1
      %p232 = por %p230, %p231
      %p234 = scmp.ne.s32.totalorder %s219, %s233
      %p235 = scmp.eq.s32.totalorder %s36, 0
      %p236 = por %p234, %p235
      %s238 = sadd.s32 %s237, 1
      %p241 = scmp.eq.s32.totalorder %s30, 1
      %p242 = scmp.ne.s32.totalorder %s237, %s239
      %p243 = scmp.eq.s32.totalorder %s30, 0
      %p244 = por %p242, %p243
      %p245 = scmp.ne.s32.totalorder %s237, %s239
      %p246 = scmp.eq.s32.totalorder %s35, 1
      %p247 = por %p245, %p246
      %p248 = scmp.ne.s32.totalorder %s239, %s240
      %p249 = scmp.eq.s32.totalorder %s35, 0
      %p250 = por %p248, %p249
      %p251 = scmp.ne.s32.totalorder %s239, %s240
      %p252 = scmp.eq.s32.totalorder %s36, 1
      %p253 = por %p251, %p252
      %p255 = scmp.ne.s32.totalorder %s240, %s254
      %p256 = scmp.eq.s32.totalorder %s36, 0
      %p257 = por %p255, %p256
      %s259 = sadd.s32 %s258, 1
      %p262 = scmp.eq.s32.totalorder %s30, 1
      %p263 = scmp.ne.s32.totalorder %s258, %s260
      %p264 = scmp.eq.s32.totalorder %s30, 0
      %p265 = por %p263, %p264
      %p266 = scmp.ne.s32.totalorder %s258, %s260
      %p267 = scmp.eq.s32.totalorder %s35, 1
      %p268 = por %p266, %p267
      %p269 = scmp.ne.s32.totalorder %s260, %s261
      %p270 = scmp.eq.s32.totalorder %s35, 0
      %p271 = por %p269, %p270
      %p272 = scmp.ne.s32.totalorder %s260, %s261
      %p273 = scmp.eq.s32.totalorder %s36, 1
      %p274 = por %p272, %p273
      %p276 = scmp.ne.s32.totalorder %s261, %s275
      %p277 = scmp.eq.s32.totalorder %s36, 0
      %p278 = por %p276, %p277
      %s280 = sadd.s32 %s279, 1
      %p283 = scmp.eq.s32.totalorder %s30, 1
      %p284 = scmp.ne.s32.totalorder %s279, %s281
      %p285 = scmp.eq.s32.totalorder %s30, 0
      %p286 = por %p284, %p285
      %p287 = scmp.ne.s32.totalorder %s279, %s281
      %p288 = scmp.eq.s32.totalorder %s35, 1
      %p289 = por %p287, %p288
      %p290 = scmp.ne.s32.totalorder %s281, %s282
      %p291 = scmp.eq.s32.totalorder %s35, 0
      %p292 = por %p290, %p291
      %p293 = scmp.ne.s32.totalorder %s281, %s282
      %p294 = scmp.eq.s32.totalorder %s36, 1
      %p295 = por %p293, %p294
      %p297 = scmp.ne.s32.totalorder %s282, %s296
      %p298 = scmp.eq.s32.totalorder %s36, 0
      %p299 = por %p297, %p298
      %s301 = sadd.s32 %s300, 1
      %p304 = scmp.eq.s32.totalorder %s30, 1
      %p305 = scmp.ne.s32.totalorder %s300, %s302
      %p306 = scmp.eq.s32.totalorder %s30, 0
      %p307 = por %p305, %p306
      %p308 = scmp.ne.s32.totalorder %s300, %s302
      %p309 = scmp.eq.s32.totalorder %s35, 1
      %p310 = por %p308, %p309
      %p311 = scmp.ne.s32.totalorder %s302, %s303
      %p312 = scmp.eq.s32.totalorder %s35, 0
      %p313 = por %p311, %p312
      %p314 = scmp.ne.s32.totalorder %s302, %s303
      %p315 = scmp.eq.s32.totalorder %s36, 1
      %p316 = por %p314, %p315
      %p318 = scmp.ne.s32.totalorder %s303, %s317
      %p319 = scmp.eq.s32.totalorder %s36, 0
      %p320 = por %p318, %p319
      %s322 = sadd.s32 %s321, 1
      %p325 = scmp.eq.s32.totalorder %s30, 1
      %p326 = scmp.ne.s32.totalorder %s321, %s323
      %p327 = scmp.eq.s32.totalorder %s30, 0
      %p328 = por %p326, %p327
      %p329 = scmp.ne.s32.totalorder %s321, %s323
      %p330 = scmp.eq.s32.totalorder %s35, 1
      %p331 = por %p329, %p330
      %p332 = scmp.ne.s32.totalorder %s323, %s324
      %p333 = scmp.eq.s32.totalorder %s35, 0
      %p334 = por %p332, %p333
      %p335 = scmp.ne.s32.totalorder %s323, %s324
      %p336 = scmp.eq.s32.totalorder %s36, 1
      %p337 = por %p335, %p336
      %p339 = scmp.ne.s32.totalorder %s324, %s338
      %p340 = scmp.eq.s32.totalorder %s36, 0
      %p341 = por %p339, %p340
      %s342 = ssub.s32 %s30, %s37
      %p343 = scmp.eq.s32.totalorder %s342, 0
      %s345 = sadd.s32 %s344, 1
      %s346 = scalar_select %p343, %s344, %s345
      %p349 = pneg %p343
      %p350 = scmp.eq.s32.totalorder %s30, 1
      %p351 = por %p349, %p350
      %p352 = scmp.ne.s32.totalorder %s344, %s347
      %p353 = scmp.eq.s32.totalorder %s30, 0
      %p354 = por %p352, %p353
      %p355 = scmp.ne.s32.totalorder %s344, %s347
      %p356 = scmp.eq.s32.totalorder %s35, 1
      %p357 = por %p355, %p356
      %p358 = scmp.ne.s32.totalorder %s347, %s348
      %p359 = scmp.eq.s32.totalorder %s35, 0
      %p360 = por %p358, %p359
      %p361 = scmp.ne.s32.totalorder %s347, %s348
      %p362 = scmp.eq.s32.totalorder %s36, 1
      %p363 = por %p361, %p362
      %p365 = scmp.ne.s32.totalorder %s348, %s364
      %p366 = scmp.eq.s32.totalorder %s36, 0
      %p367 = por %p365, %p366
      %p368 = scmp.le.s32.totalorder 1, %s30
      %p369 = scmp.lt.s32.totalorder %s30, 3
      %p370 = pnand %p368, %p369
      %p371 = pneg %p370
      // Predicated region
      $region9: #{encoder_forward.1} parent=5 // pred_check
        _
      $region10: #{encoder_forward.1} parent=5 // pred_check_branch
        %373 = sbr.rel (%p370) target = $region12
      $region11: #{encoder_forward.1} parent=5 // pred_region
        %s374 = ssub.s32 %s30, 1
        // Predicated region
        $region13: #{encoder_forward.1} parent=11 // pred_check
          %p375 = pneg %p103
        $region14: #{encoder_forward.1} parent=11 // pred_check_branch
          %377 = sbr.rel (%p375) target = $region16
        $region15: #{encoder_forward.1} parent=11 // pred_region
          _
        $region16: #{encoder_forward.1} parent=11 // pred_fallthru
          _
        // Predicated region
        $region17: #{encoder_forward.1} parent=11 // pred_check
          %p378 = pneg %p124
        $region18: #{encoder_forward.1} parent=11 // pred_check_branch
          %380 = sbr.rel (%p378) target = $region20
        $region19: #{encoder_forward.1} parent=11 // pred_region
          %382 = vsyncadd [#allocation6], 0
          %s383 = sshll.u32 %s3, 4
          %s384 = int_to_ptr.hbm [resolvable:$true] %s383
          %s385 = sshll.u32 [#allocation5], 4
          %s386 = int_to_ptr.vmem [resolvable:$true] %s385
          %391 = dma.hbm_to_vmem [thread:$0]  %s384, 32, %s386, [#allocation6], 16, 16, 1
        $region20: #{encoder_forward.1} parent=11 // pred_fallthru
          _
        // Predicated region
        $region21: #{encoder_forward.1} parent=11 // pred_check
          %p392 = pneg %p145
        $region22: #{encoder_forward.1} parent=11 // pred_check_branch
          %394 = sbr.rel (%p392) target = $region24
        $region23: #{encoder_forward.1} parent=11 // pred_region
          _
        $region24: #{encoder_forward.1} parent=11 // pred_fallthru
          _
        // Predicated region
        $region25: #{encoder_forward.1} parent=11 // pred_check
          %p395 = pneg %p166
        $region26: #{encoder_forward.1} parent=11 // pred_check_branch
          %397 = sbr.rel (%p395) target = $region28
        $region27: #{encoder_forward.1} parent=11 // pred_region
          %399 = vsyncadd [#allocation6], 0
          %s400 = sshll.u32 %s5, 4
          %s401 = int_to_ptr.hbm [resolvable:$true] %s400
          %s402 = sshll.u32 [#allocation7], 4
          %s403 = int_to_ptr.vmem [resolvable:$true] %s402
          %408 = dma.hbm_to_vmem [thread:$0]  %s401, 32, %s403, [#allocation6], 16, 16, 1
        $region28: #{encoder_forward.1} parent=11 // pred_fallthru
          _
        // Predicated region
        $region29: #{encoder_forward.1} parent=11 // pred_check
          %p409 = pneg %p187
        $region30: #{encoder_forward.1} parent=11 // pred_check_branch
          %411 = sbr.rel (%p409) target = $region32
        $region31: #{encoder_forward.1} parent=11 // pred_region
          _
        $region32: #{encoder_forward.1} parent=11 // pred_fallthru
          _
        // Predicated region
        $region33: #{encoder_forward.1} parent=11 // pred_check
          %p412 = pneg %p208
        $region34: #{encoder_forward.1} parent=11 // pred_check_branch
          %414 = sbr.rel (%p412) target = $region36
        $region35: #{encoder_forward.1} parent=11 // pred_region
          %416 = vsyncadd [#allocation9], 0
          %s417 = sshll.u32 %s7, 4
          %s418 = int_to_ptr.hbm [resolvable:$true] %s417
          %s419 = sshll.u32 [#allocation8], 4
          %s420 = int_to_ptr.vmem [resolvable:$true] %s419
          %425 = dma.hbm_to_vmem [thread:$0]  %s418, 32, %s420, [#allocation9], 16, 16, 1
        $region36: #{encoder_forward.1} parent=11 // pred_fallthru
          _
        // Predicated region
        $region37: #{encoder_forward.1} parent=11 // pred_check
          %p426 = pneg %p229
        $region38: #{encoder_forward.1} parent=11 // pred_check_branch
          %428 = sbr.rel (%p426) target = $region40
        $region39: #{encoder_forward.1} parent=11 // pred_region
          _
        $region40: #{encoder_forward.1} parent=11 // pred_fallthru
          _
        // Predicated region
        $region41: #{encoder_forward.1} parent=11 // pred_check
          %p429 = pneg %p250
        $region42: #{encoder_forward.1} parent=11 // pred_check_branch
          %431 = sbr.rel (%p429) target = $region44
        $region43: #{encoder_forward.1} parent=11 // pred_region
          %433 = vsyncadd [#allocation9], 0
          %s434 = sshll.u32 %s9, 4
          %s435 = int_to_ptr.hbm [resolvable:$true] %s434
          %s436 = sshll.u32 [#allocation10], 4
          %s437 = int_to_ptr.vmem [resolvable:$true] %s436
          %442 = dma.hbm_to_vmem [thread:$0]  %s435, 32, %s437, [#allocation9], 16, 16, 1
        $region44: #{encoder_forward.1} parent=11 // pred_fallthru
          _
        // Predicated region
        $region45: #{encoder_forward.1} parent=11 // pred_check
          %p443 = pneg %p271
        $region46: #{encoder_forward.1} parent=11 // pred_check_branch
          %445 = sbr.rel (%p443) target = $region48
        $region47: #{encoder_forward.1} parent=11 // pred_region
          %447 = vsyncadd [#allocation12], 0
          %s448 = sshll.u32 %s10, 4
          %s449 = int_to_ptr.hbm [resolvable:$true] %s448
          %s450 = sshll.u32 [#allocation11], 4
          %s451 = int_to_ptr.vmem [resolvable:$true] %s450
          %456 = dma.hbm_to_vmem [thread:$0]  %s449, 32, %s451, [#allocation12], 16, 16, 1
        $region48: #{encoder_forward.1} parent=11 // pred_fallthru
          _
        // Predicated region
        $region49: #{encoder_forward.1} parent=11 // pred_check
          %p457 = pneg %p292
        $region50: #{encoder_forward.1} parent=11 // pred_check_branch
          %459 = sbr.rel (%p457) target = $region52
        $region51: #{encoder_forward.1} parent=11 // pred_region
          %461 = vsyncadd [#allocation12], 0
          %s462 = sshll.u32 %s11, 4
          %s463 = int_to_ptr.hbm [resolvable:$true] %s462
          %s464 = sshll.u32 [#allocation13], 4
          %s465 = int_to_ptr.vmem [resolvable:$true] %s464
          %470 = dma.hbm_to_vmem [thread:$0]  %s463, 32, %s465, [#allocation12], 16, 16, 1
        $region52: #{encoder_forward.1} parent=11 // pred_fallthru
          _
        // Predicated region
        $region53: #{encoder_forward.1} parent=11 // pred_check
          %p471 = pneg %p313
        $region54: #{encoder_forward.1} parent=11 // pred_check_branch
          %473 = sbr.rel (%p471) target = $region56
        $region55: #{encoder_forward.1} parent=11 // pred_region
          _
        $region56: #{encoder_forward.1} parent=11 // pred_fallthru
          _
        // Predicated region
        $region57: #{encoder_forward.1} parent=11 // pred_check
          %p474 = pneg %p334
        $region58: #{encoder_forward.1} parent=11 // pred_check_branch
          %476 = sbr.rel (%p474) target = $region60
        $region59: #{encoder_forward.1} parent=11 // pred_region
          %478 = vsyncadd [#allocation15], 0
          %s479 = sshll.u32 %s13, 4
          %s480 = int_to_ptr.hbm [resolvable:$true] %s479
          %s481 = sshll.u32 [#allocation14], 4
          %s482 = int_to_ptr.vmem [resolvable:$true] %s481
          %487 = dma.hbm_to_vmem [thread:$0]  %s480, 32, %s482, [#allocation15], 16, 16, 1
        $region60: #{encoder_forward.1} parent=11 // pred_fallthru
          _
      $region12: #{encoder_forward.1} parent=5 // pred_fallthru
        _
      %p488 = scmp.lt.s32.totalorder %s30, 2
      // Predicated region
      $region61: #{encoder_forward.1} parent=5 // pred_check
        %p489 = pneg %p488
      $region62: #{encoder_forward.1} parent=5 // pred_check_branch
        %491 = sbr.rel (%p489) target = $region64
      $region63: #{encoder_forward.1} parent=5 // pred_region
        // Predicated region
        $region65: #{encoder_forward.1} parent=63 // pred_check
          %p492 = pneg %p50
        $region66: #{encoder_forward.1} parent=63 // pred_check_branch
          %494 = sbr.rel (%p492) target = $region68
        $region67: #{encoder_forward.1} parent=63 // pred_region
          %s495 = sand.u32 %s40, 1
          %s496 = scalar_lea.sflag [#allocation3], %s495
          %s497 = sand.u32 %s40, 1
          %s498 = smul.addr %s497, 16
          %s499 = scalar_lea.vmem [#allocation2], %s498
          %501 = vsyncadd %s496, 0
          %s502 = smul.addr %s30, 2
          %s503 = smul.addr %s502, 8
          %s504 = scalar_lea.hbm %s0, %s503
          %s505 = sshll.u32 %s504, 4
          %s506 = int_to_ptr.hbm [resolvable:$true] %s505
          %s507 = sshll.u32 %s499, 4
          %s508 = int_to_ptr.vmem [resolvable:$true] %s507
          %513 = dma.hbm_to_vmem [thread:$0]  %s506, 256, %s508, %s496, 128, 128, 8
        $region68: #{encoder_forward.1} parent=63 // pred_fallthru
          _
        // Predicated region
        $region69: #{encoder_forward.1} parent=63 // pred_check
          %p514 = pneg %p76
        $region70: #{encoder_forward.1} parent=63 // pred_check_branch
          %516 = sbr.rel (%p514) target = $region72
        $region71: #{encoder_forward.1} parent=63 // pred_region
          %p517 = scmp.lt.s32.totalorder %s30, 1
          %s518 = scalar_select %p517, %s30, 1
          %s519 = scalar_lea.vmem %s1, %s518
        $region72: #{encoder_forward.1} parent=63 // pred_fallthru
          _
      $region64: #{encoder_forward.1} parent=5 // pred_fallthru
        _
      %p520 = scmp.le.s32.totalorder 1, %s30
      %p521 = scmp.lt.s32.totalorder %s30, 3
      %p522 = pnand %p520, %p521
      %p523 = pneg %p522
      // Predicated region
      $region73: #{encoder_forward.1} parent=5 // pred_check
        _
      $region74: #{encoder_forward.1} parent=5 // pred_check_branch
        %525 = sbr.rel (%p522) target = $region76
      $region75: #{encoder_forward.1} parent=5 // pred_region
        %s526 = ssub.s32 %s30, 1
        %s527 = sand.u32 %s43, 1
        %s528 = scalar_lea.sflag [#allocation3], %s527
        %s529 = sand.u32 %s43, 1
        %s530 = smul.addr %s529, 16
        %s531 = scalar_lea.vmem [#allocation2], %s530
        // Predicated region
        $region77: #{encoder_forward.1} parent=75 // pred_check
          %p532 = pneg %p56
        $region78: #{encoder_forward.1} parent=75 // pred_check_branch
          %534 = sbr.rel (%p532) target = $region80
        $region79: #{encoder_forward.1} parent=75 // pred_region
          %536 = dma.done %s528, 256
        $region80: #{encoder_forward.1} parent=75 // pred_fallthru
          _
        // Predicated region
        $region81: #{encoder_forward.1} parent=75 // pred_check
          %p537 = pneg %p124
        $region82: #{encoder_forward.1} parent=75 // pred_check_branch
          %539 = sbr.rel (%p537) target = $region84
        $region83: #{encoder_forward.1} parent=75 // pred_region
          %541 = dma.done [#allocation6], 32
        $region84: #{encoder_forward.1} parent=75 // pred_fallthru
          _
        // Predicated region
        $region85: #{encoder_forward.1} parent=75 // pred_check
          %p542 = pneg %p166
        $region86: #{encoder_forward.1} parent=75 // pred_check_branch
          %544 = sbr.rel (%p542) target = $region88
        $region87: #{encoder_forward.1} parent=75 // pred_region
          %546 = dma.done [#allocation6], 32
        $region88: #{encoder_forward.1} parent=75 // pred_fallthru
          _
        // Predicated region
        $region89: #{encoder_forward.1} parent=75 // pred_check
          %p547 = pneg %p208
        $region90: #{encoder_forward.1} parent=75 // pred_check_branch
          %549 = sbr.rel (%p547) target = $region92
        $region91: #{encoder_forward.1} parent=75 // pred_region
          %551 = dma.done [#allocation9], 32
        $region92: #{encoder_forward.1} parent=75 // pred_fallthru
          _
        // Predicated region
        $region93: #{encoder_forward.1} parent=75 // pred_check
          %p552 = pneg %p250
        $region94: #{encoder_forward.1} parent=75 // pred_check_branch
          %554 = sbr.rel (%p552) target = $region96
        $region95: #{encoder_forward.1} parent=75 // pred_region
          %556 = dma.done [#allocation9], 32
        $region96: #{encoder_forward.1} parent=75 // pred_fallthru
          _
        // Predicated region
        $region97: #{encoder_forward.1} parent=75 // pred_check
          %p557 = pneg %p271
        $region98: #{encoder_forward.1} parent=75 // pred_check_branch
          %559 = sbr.rel (%p557) target = $region100
        $region99: #{encoder_forward.1} parent=75 // pred_region
          %561 = dma.done [#allocation12], 32
        $region100: #{encoder_forward.1} parent=75 // pred_fallthru
          _
        // Predicated region
        $region101: #{encoder_forward.1} parent=75 // pred_check
          %p562 = pneg %p292
        $region102: #{encoder_forward.1} parent=75 // pred_check_branch
          %564 = sbr.rel (%p562) target = $region104
        $region103: #{encoder_forward.1} parent=75 // pred_region
          %566 = dma.done [#allocation12], 32
        $region104: #{encoder_forward.1} parent=75 // pred_fallthru
          _
        // Predicated region
        $region105: #{encoder_forward.1} parent=75 // pred_check
          %p567 = pneg %p334
        $region106: #{encoder_forward.1} parent=75 // pred_check_branch
          %569 = sbr.rel (%p567) target = $region108
        $region107: #{encoder_forward.1} parent=75 // pred_region
          %571 = dma.done [#allocation15], 32
        $region108: #{encoder_forward.1} parent=75 // pred_fallthru
          _
        %s572 = sand.u32 %s43, 1
        %s573 = scalar_lea.sflag [#allocation3], %s572
        %s574 = sand.u32 %s43, 1
        %s575 = smul.addr %s574, 16
        %s576 = scalar_lea.vmem [#allocation2], %s575
        %p577 = pneg %p56
        %p578 = pneg %p53
        %p579 = scmp.lt.s32.totalorder %s35, 1
        %s580 = scalar_select %p579, %s35, 1
        %s581 = scalar_lea.vmem %s1, %s580
        %p582 = pneg %p82
        %p583 = pneg %p79
        %p584 = pneg %p103
        %p585 = pneg %p100
        %p586 = pneg %p124
        %p587 = pneg %p121
        %p588 = pneg %p145
        %p589 = pneg %p142
        %p590 = pneg %p166
        %p591 = pneg %p163
        %p592 = pneg %p187
        %p593 = pneg %p184
        %p594 = pneg %p208
        %p595 = pneg %p205
        %p596 = pneg %p229
        %p597 = pneg %p226
        %p598 = pneg %p250
        %p599 = pneg %p247
        %p600 = pneg %p271
        %p601 = pneg %p268
        %p602 = pneg %p292
        %p603 = pneg %p289
        %p604 = pneg %p313
        %p605 = pneg %p310
        %p606 = pneg %p334
        %p607 = pneg %p331
        %p608 = pneg %p360
        %p609 = pneg %p357
        %s610 = sand.u32 %s347, 1
        %s611 = scalar_lea.sflag [#allocation4], %s610
        %s612 = sand.u32 %s347, 1
        %s613 = smul.addr %s612, 16
        %s614 = scalar_lea.vmem [#allocation16], %s613
        %p615 = scmp.lt.s32.totalorder %s35, 1
        %s616 = scalar_select %p615, %s35, 1
        %s617 = scalar_lea.vmem %s1, %s616
        %v618 = vld [vmem:[%s531] sm:$0xff]
        %v619 = vld [vmem:[%s531 + $0x8] sm:$0xff]
        %v620 = vld [vmem:[%s617] sm:$0x1]
        %vm621 = vcmp.gt.f32.partialorder %v620, 0.5
        %v622 = vsel %vm621, 1, 0
        %v623 = vperm.slane %v622, 0
        %vm624 = vcmp.eq.s32.totalorder %v623, 1
        %v625 = vld [vmem:[#allocation11] sm:$0x1]
        %v626 = vld [vmem:[#allocation13] sm:$0x1]
        %vm627 = vcmask 261120
        %v628 = vsel %vm627, %v618, 0.0
        %629 = vadd.xlane.f32.xlu0 %v628
        %v630 = vpop.xlane.xlu0 %629
        %v631 = vsel %vm627, %v619, 0.0
        %632 = vadd.xlane.f32.xlu0 %v631
        %v633 = vpop.xlane.xlu0 %632
        %v634 = vrcp.pop 32.0
        %v635 = vmul.f32 32.0, %v634
        %v636 = vsub.f32 1.0, %v635
        %v637 = vmul.f32 %v634, %v636
        %v638 = vadd.f32 %v634, %v637
        %vm639 = vweird.f32 %v634
        %v640 = vsel %vm639, %v634, %v638
        %v641 = vmul.f32 %v630, %v640
        %v642 = vmul.f32 %v633, %v640
        %v643 = vsub.f32 %v618, %v641
        %v644 = vsub.f32 %v619, %v642
        %v645 = vmul.f32 %v643, %v643
        %v646 = vmul.f32 %v644, %v644
        %v647 = vsel %vm627, %v645, 0.0
        %648 = vadd.xlane.f32.xlu0 %v647
        %v649 = vpop.xlane.xlu0 %648
        %v650 = vsel %vm627, %v646, 0.0
        %651 = vadd.xlane.f32.xlu0 %v650
        %v652 = vpop.xlane.xlu0 %651
        %v653 = vrcp.pop 31.0
        %v654 = vmul.f32 31.0, %v653
        %v655 = vsub.f32 1.0, %v654
        %v656 = vmul.f32 %v653, %v655
        %v657 = vadd.f32 %v653, %v656
        %vm658 = vweird.f32 %v653
        %v659 = vsel %vm658, %v653, %v657
        %v660 = vmul.f32 %v649, %v659
        %v661 = vmul.f32 %v652, %v659
        %v663 = vperm.slane %v625, 0
        %v665 = vmul.f32 %v663, %v643
        %v666 = vmul.f32 %v663, %v644
        %v667 = vrsqrt.pop %v660
        %v668 = vmul.f32 %v667, %v660
        %v669 = vmul.f32 %v668, %v667
        %v670 = vmul.f32 0.5, %v669
        %v671 = vsub.f32 1.5, %v670
        %v672 = vmul.f32 %v667, %v671
        %v673 = vmul.f32 %v660, %v672
        %vm674 = vcmp.eq.f32.partialorder %v660, inf
        %v675 = vsel %vm674, %v660, %v673
        %vm676 = vcmp.eq.f32.partialorder %v660, 0.0
        %v677 = vand.u32 %v660, 2147483648
        %v678 = vsel %vm676, %v677, %v675
        %v679 = vrsqrt.pop %v661
        %v680 = vmul.f32 %v679, %v661
        %v681 = vmul.f32 %v680, %v679
        %v682 = vmul.f32 0.5, %v681
        %v683 = vsub.f32 1.5, %v682
        %v684 = vmul.f32 %v679, %v683
        %v685 = vmul.f32 %v661, %v684
        %vm686 = vcmp.eq.f32.partialorder %v661, inf
        %v687 = vsel %vm686, %v661, %v685
        %vm688 = vcmp.eq.f32.partialorder %v661, 0.0
        %v689 = vand.u32 %v661, 2147483648
        %v690 = vsel %vm688, %v689, %v687
        %v691 = vadd.f32 %v678, 1e-06
        %v692 = vadd.f32 %v690, 1e-06
        %v693 = vrcp.pop %v691
        %v694 = vmul.f32 %v691, %v693
        %v695 = vsub.f32 1.0, %v694
        %v696 = vmul.f32 %v693, %v695
        %v697 = vadd.f32 %v693, %v696
        %vm698 = vweird.f32 %v691
        %vm699 = vweird.f32 %v693
        %vm700 = vmor %vm698, %vm699
        %v701 = vsel %vm700, %v693, %v697
        %v702 = vand.u32 2147483647, %v691
        %vm703 = vcmp.eq.f32.partialorder %v702, 8.507059e+37
        %v704 = vand.u32 %v691, 2147483648
        %v705 = vor.u32 1.1754944e-38, %v704
        %v706 = vsel %vm703, %v705, %v701
        %v707 = vmul.f32 %v665, %v706
        %v708 = vrcp.pop %v692
        %v709 = vmul.f32 %v692, %v708
        %v710 = vsub.f32 1.0, %v709
        %v711 = vmul.f32 %v708, %v710
        %v712 = vadd.f32 %v708, %v711
        %vm713 = vweird.f32 %v692
        %vm714 = vweird.f32 %v708
        %vm715 = vmor %vm713, %vm714
        %v716 = vsel %vm715, %v708, %v712
        %v717 = vand.u32 2147483647, %v692
        %vm718 = vcmp.eq.f32.partialorder %v717, 8.507059e+37
        %v719 = vand.u32 %v692, 2147483648
        %v720 = vor.u32 1.1754944e-38, %v719
        %v721 = vsel %vm718, %v720, %v716
        %v722 = vmul.f32 %v666, %v721
        %v724 = vperm.slane %v626, 0
        %v726 = vadd.f32 %v707, %v724
        %v727 = vadd.f32 %v722, %v724
        %v728 = vld [vmem:[%s2] sm:$0xff]
        %v729 = vld [vmem:[%s2 + $0x8] sm:$0xff]
        %v730 = vld [vmem:[%s2 + $0x10] sm:$0xff]
        %v731 = vld [vmem:[%s2 + $0x18] sm:$0xff]
        %v732 = vld [vmem:[#allocation5] sm:$0x1]
        %v734 = vperm.slane %v732, 0
        %v737 = vsel %vm627, %v726, 0
        %v740 = vsel %vm627, %v727, 0
        %742 = vmatpush.msra.mxu0 0.0
        %743 = vmatpush.msra.mxu0 0.0
        %744 = vmatpush.msra.mxu0 0.0
        %745 = vmatpush.msra.mxu0 0.0
        %746 = vmatpush.msra.mxu0 0.0
        %747 = vmatpush.msra.mxu0 0.0
        %748 = vmatpush.msra.mxu0 0.0
        %749 = vmatpush.msra.mxu0 0.0
        %750 = vmatpush.msra.mxu0 0.0
        %751 = vmatpush.msra.mxu0 0.0
        %752 = vmatpush.msra.mxu0 0.0
        %753 = vmatpush.msra.mxu0 0.0
        %754 = vmatpush.msra.mxu0 %v731
        %755 = vmatpush.msra.mxu0 %v730
        %756 = vmatpush.msra.mxu0 %v729
        %757 = vmatpush.msra.mxu0 %v728
        %758 = vmatmul.f32.gmra.mxu0 %v737
        %v759 = vpop.f32.mrf.mxu0
        %v760 = vadd.f32 %v734, %v759
        %761 = vmatmul.f32.gmra.mxu0 %v740
        %v762 = vpop.f32.mrf.mxu0
        %v763 = vadd.f32 %v734, %v762
        %764 = vdwg.mxu0
        %767 = vrot.lane.b32.xlu0 %v760, 96
        %v768 = vpop.permute.xlu0 %767
        %769 = vrot.lane.b32.xlu0 %v763, 96
        %v770 = vpop.permute.xlu0 %769
        %vm771 = vcmask 64512
        %v772 = vsel %vm771, %v760, 0
        %v774 = vsel %vm771, %v763, 0
        %v776 = vsel %vm771, %v768, 0
        %v778 = vsel %vm771, %v770, 0
        %780 = vmatpush.xpose.msra.mxu0 0.0
        %781 = vmatpush.xpose.msra.mxu0 0.0
        %782 = vmatpush.xpose.msra.mxu0 0.0
        %783 = vmatpush.xpose.msra.mxu0 0.0
        %784 = vmatpush.xpose.msra.mxu0 0.0
        %785 = vmatpush.xpose.msra.mxu0 0.0
        %786 = vmatpush.xpose.msra.mxu0 0.0
        %787 = vmatpush.xpose.msra.mxu0 0.0
        %788 = vmatpush.xpose.msra.mxu0 0.0
        %789 = vmatpush.xpose.msra.mxu0 0.0
        %790 = vmatpush.xpose.msra.mxu0 0.0
        %791 = vmatpush.xpose.msra.mxu0 0.0
        %792 = vmatpush.xpose.msra.mxu0 0.0
        %793 = vmatpush.xpose.msra.mxu0 0.0
        %794 = vmatpush.xpose.msra.mxu0 %v778
        %795 = vmatpush.xpose.msra.mxu0 %v776
        %796 = vmatmul.f32.gmra.mxu0 %v772
        %v797 = vpop.f32.mrf.mxu0
        %v798 = vadd.f32 0.0, %v797
        %799 = vmatmul.f32.gmra.mxu0 %v774
        %v800 = vpop.f32.mrf.mxu0
        %v801 = vadd.f32 0.0, %v800
        %802 = vdwg.mxu0
        %v803 = vmul.f32 %v798, 0.35355338
        %v804 = vmul.f32 %v801, 0.35355338
        %v805 = vsel %vm624, %v803, -1e+09
        %v806 = vsel %vm624, %v804, -1e+09
        %vm807 = vcmask 130048
        %v808 = vsel %vm807, %v805, -inf
        %809 = vmax.xlane.f32.xlu0 %v808
        %v810 = vpop.xlane.xlu0 %809
        %v811 = vsel %vm807, %v806, -inf
        %812 = vmax.xlane.f32.xlu0 %v811
        %v813 = vpop.xlane.xlu0 %812
        %v814 = vsub.f32 %v805, %v810
        %v815 = vsub.f32 %v806, %v813
        %v816 = vmul.f32 %v814, 1.442695
        %v817 = vpow.pop %v816
        %v818 = vmul.f32 %v815, 1.442695
        %v819 = vpow.pop %v818
        %v820 = vsel %vm807, %v817, 0.0
        %821 = vadd.xlane.f32.xlu0 %v820
        %v822 = vpop.xlane.xlu0 %821
        %v823 = vsel %vm807, %v819, 0.0
        %824 = vadd.xlane.f32.xlu0 %v823
        %v825 = vpop.xlane.xlu0 %824
        %v826 = vrcp.pop %v822
        %v827 = vmul.f32 %v822, %v826
        %v828 = vsub.f32 1.0, %v827
        %v829 = vmul.f32 %v826, %v828
        %v830 = vadd.f32 %v826, %v829
        %vm831 = vweird.f32 %v822
        %vm832 = vweird.f32 %v826
        %vm833 = vmor %vm831, %vm832
        %v834 = vsel %vm833, %v826, %v830
        %v835 = vand.u32 2147483647, %v822
        %vm836 = vcmp.eq.f32.partialorder %v835, 8.507059e+37
        %v837 = vand.u32 %v822, 2147483648
        %v838 = vor.u32 1.1754944e-38, %v837
        %v839 = vsel %vm836, %v838, %v834
        %v840 = vmul.f32 %v817, %v839
        %v841 = vrcp.pop %v825
        %v842 = vmul.f32 %v825, %v841
        %v843 = vsub.f32 1.0, %v842
        %v844 = vmul.f32 %v841, %v843
        %v845 = vadd.f32 %v841, %v844
        %vm846 = vweird.f32 %v825
        %vm847 = vweird.f32 %v841
        %vm848 = vmor %vm846, %vm847
        %v849 = vsel %vm848, %v841, %v845
        %v850 = vand.u32 2147483647, %v825
        %vm851 = vcmp.eq.f32.partialorder %v850, 8.507059e+37
        %v852 = vand.u32 %v825, 2147483648
        %v853 = vor.u32 1.1754944e-38, %v852
        %v854 = vsel %vm851, %v853, %v849
        %v855 = vmul.f32 %v819, %v854
        %856 = vrot.lane.b32.xlu0 %v760, 64
        %v857 = vpop.permute.xlu0 %856
        %858 = vrot.lane.b32.xlu0 %v763, 64
        %v859 = vpop.permute.xlu0 %858
        %v863 = vsel %vm807, %v840, 0
        %v866 = vsel %vm807, %v855, 0
        %868 = vmatpush.msra.mxu0 0.0
        %869 = vmatpush.msra.mxu0 0.0
        %870 = vmatpush.msra.mxu0 0.0
        %871 = vmatpush.msra.mxu0 0.0
        %872 = vmatpush.msra.mxu0 0.0
        %873 = vmatpush.msra.mxu0 0.0
        %874 = vmatpush.msra.mxu0 0.0
        %875 = vmatpush.msra.mxu0 0.0
        %876 = vmatpush.msra.mxu0 0.0
        %877 = vmatpush.msra.mxu0 0.0
        %878 = vmatpush.msra.mxu0 0.0
        %879 = vmatpush.msra.mxu0 0.0
        %880 = vmatpush.msra.mxu0 0.0
        %881 = vmatpush.msra.mxu0 0.0
        %882 = vmatpush.msra.mxu0 %v859
        %883 = vmatpush.msra.mxu0 %v857
        %884 = vmatmul.f32.gmra.mxu0 %v863
        %v885 = vpop.f32.mrf.mxu0
        %v886 = vadd.f32 0.0, %v885
        %887 = vmatmul.f32.gmra.mxu0 %v866
        %v888 = vpop.f32.mrf.mxu0
        %v889 = vadd.f32 0.0, %v888
        %890 = vdwg.mxu0
        %891 = vrot.lane.b32.xlu0 %v760, 120
        %v892 = vpop.permute.xlu0 %891
        %893 = vrot.lane.b32.xlu0 %v763, 120
        %v894 = vpop.permute.xlu0 %893
        %895 = vrot.lane.b32.xlu0 %v760, 88
        %v896 = vpop.permute.xlu0 %895
        %897 = vrot.lane.b32.xlu0 %v763, 88
        %v898 = vpop.permute.xlu0 %897
        %v899 = vsel %vm771, %v892, 0
        %v901 = vsel %vm771, %v894, 0
        %v903 = vsel %vm771, %v896, 0
        %v905 = vsel %vm771, %v898, 0
        %907 = vmatpush.xpose.msra.mxu0 0.0
        %908 = vmatpush.xpose.msra.mxu0 0.0
        %909 = vmatpush.xpose.msra.mxu0 0.0
        %910 = vmatpush.xpose.msra.mxu0 0.0
        %911 = vmatpush.xpose.msra.mxu0 0.0
        %912 = vmatpush.xpose.msra.mxu0 0.0
        %913 = vmatpush.xpose.msra.mxu0 0.0
        %914 = vmatpush.xpose.msra.mxu0 0.0
        %915 = vmatpush.xpose.msra.mxu0 0.0
        %916 = vmatpush.xpose.msra.mxu0 0.0
        %917 = vmatpush.xpose.msra.mxu0 0.0
        %918 = vmatpush.xpose.msra.mxu0 0.0
        %919 = vmatpush.xpose.msra.mxu0 0.0
        %920 = vmatpush.xpose.msra.mxu0 0.0
        %921 = vmatpush.xpose.msra.mxu0 %v905
        %922 = vmatpush.xpose.msra.mxu0 %v903
        %923 = vmatmul.f32.gmra.mxu0 %v899
        %v924 = vpop.f32.mrf.mxu0
        %v925 = vadd.f32 0.0, %v924
        %926 = vmatmul.f32.gmra.mxu0 %v901
        %v927 = vpop.f32.mrf.mxu0
        %v928 = vadd.f32 0.0, %v927
        %929 = vdwg.mxu0
        %v930 = vmul.f32 %v925, 0.35355338
        %v931 = vmul.f32 %v928, 0.35355338
        %v932 = vsel %vm624, %v930, -1e+09
        %v933 = vsel %vm624, %v931, -1e+09
        %v934 = vsel %vm807, %v932, -inf
        %935 = vmax.xlane.f32.xlu0 %v934
        %v936 = vpop.xlane.xlu0 %935
        %v937 = vsel %vm807, %v933, -inf
        %938 = vmax.xlane.f32.xlu0 %v937
        %v939 = vpop.xlane.xlu0 %938
        %v940 = vsub.f32 %v932, %v936
        %v941 = vsub.f32 %v933, %v939
        %v942 = vmul.f32 %v940, 1.442695
        %v943 = vpow.pop %v942
        %v944 = vmul.f32 %v941, 1.442695
        %v945 = vpow.pop %v944
        %v946 = vsel %vm807, %v943, 0.0
        %947 = vadd.xlane.f32.xlu0 %v946
        %v948 = vpop.xlane.xlu0 %947
        %v949 = vsel %vm807, %v945, 0.0
        %950 = vadd.xlane.f32.xlu0 %v949
        %v951 = vpop.xlane.xlu0 %950
        %v952 = vrcp.pop %v948
        %v953 = vmul.f32 %v948, %v952
        %v954 = vsub.f32 1.0, %v953
        %v955 = vmul.f32 %v952, %v954
        %v956 = vadd.f32 %v952, %v955
        %vm957 = vweird.f32 %v948
        %vm958 = vweird.f32 %v952
        %vm959 = vmor %vm957, %vm958
        %v960 = vsel %vm959, %v952, %v956
        %v961 = vand.u32 2147483647, %v948
        %vm962 = vcmp.eq.f32.partialorder %v961, 8.507059e+37
        %v963 = vand.u32 %v948, 2147483648
        %v964 = vor.u32 1.1754944e-38, %v963
        %v965 = vsel %vm962, %v964, %v960
        %v966 = vmul.f32 %v943, %v965
        %v967 = vrcp.pop %v951
        %v968 = vmul.f32 %v951, %v967
        %v969 = vsub.f32 1.0, %v968
        %v970 = vmul.f32 %v967, %v969
        %v971 = vadd.f32 %v967, %v970
        %vm972 = vweird.f32 %v951
        %vm973 = vweird.f32 %v967
        %vm974 = vmor %vm972, %vm973
        %v975 = vsel %vm974, %v967, %v971
        %v976 = vand.u32 2147483647, %v951
        %vm977 = vcmp.eq.f32.partialorder %v976, 8.507059e+37
        %v978 = vand.u32 %v951, 2147483648
        %v979 = vor.u32 1.1754944e-38, %v978
        %v980 = vsel %vm977, %v979, %v975
        %v981 = vmul.f32 %v945, %v980
        %982 = vrot.lane.b32.xlu0 %v760, 56
        %v983 = vpop.permute.xlu0 %982
        %984 = vrot.lane.b32.xlu0 %v763, 56
        %v985 = vpop.permute.xlu0 %984
        %v989 = vsel %vm807, %v966, 0
        %v992 = vsel %vm807, %v981, 0
        %994 = vmatpush.msra.mxu0 0.0
        %995 = vmatpush.msra.mxu0 0.0
        %996 = vmatpush.msra.mxu0 0.0
        %997 = vmatpush.msra.mxu0 0.0
        %998 = vmatpush.msra.mxu0 0.0
        %999 = vmatpush.msra.mxu0 0.0
        %1000 = vmatpush.msra.mxu0 0.0
        %1001 = vmatpush.msra.mxu0 0.0
        %1002 = vmatpush.msra.mxu0 0.0
        %1003 = vmatpush.msra.mxu0 0.0
        %1004 = vmatpush.msra.mxu0 0.0
        %1005 = vmatpush.msra.mxu0 0.0
        %1006 = vmatpush.msra.mxu0 0.0
        %1007 = vmatpush.msra.mxu0 0.0
        %1008 = vmatpush.msra.mxu0 %v985
        %1009 = vmatpush.msra.mxu0 %v983
        %1010 = vmatmul.f32.gmra.mxu0 %v989
        %v1011 = vpop.f32.mrf.mxu0
        %v1012 = vadd.f32 0.0, %v1011
        %1013 = vmatmul.f32.gmra.mxu0 %v992
        %v1014 = vpop.f32.mrf.mxu0
        %v1015 = vadd.f32 0.0, %v1014
        %1016 = vdwg.mxu0
        %1017 = vrot.lane.b32.xlu0 %v760, 112
        %v1018 = vpop.permute.xlu0 %1017
        %1019 = vrot.lane.b32.xlu0 %v763, 112
        %v1020 = vpop.permute.xlu0 %1019
        %1021 = vrot.lane.b32.xlu0 %v760, 80
        %v1022 = vpop.permute.xlu0 %1021
        %1023 = vrot.lane.b32.xlu0 %v763, 80
        %v1024 = vpop.permute.xlu0 %1023
        %v1025 = vsel %vm771, %v1018, 0
        %v1027 = vsel %vm771, %v1020, 0
        %v1029 = vsel %vm771, %v1022, 0
        %v1031 = vsel %vm771, %v1024, 0
        %1033 = vmatpush.xpose.msra.mxu0 0.0
        %1034 = vmatpush.xpose.msra.mxu0 0.0
        %1035 = vmatpush.xpose.msra.mxu0 0.0
        %1036 = vmatpush.xpose.msra.mxu0 0.0
        %1037 = vmatpush.xpose.msra.mxu0 0.0
        %1038 = vmatpush.xpose.msra.mxu0 0.0
        %1039 = vmatpush.xpose.msra.mxu0 0.0
        %1040 = vmatpush.xpose.msra.mxu0 0.0
        %1041 = vmatpush.xpose.msra.mxu0 0.0
        %1042 = vmatpush.xpose.msra.mxu0 0.0
        %1043 = vmatpush.xpose.msra.mxu0 0.0
        %1044 = vmatpush.xpose.msra.mxu0 0.0
        %1045 = vmatpush.xpose.msra.mxu0 0.0
        %1046 = vmatpush.xpose.msra.mxu0 0.0
        %1047 = vmatpush.xpose.msra.mxu0 %v1031
        %1048 = vmatpush.xpose.msra.mxu0 %v1029
        %1049 = vmatmul.f32.gmra.mxu0 %v1025
        %v1050 = vpop.f32.mrf.mxu0
        %v1051 = vadd.f32 0.0, %v1050
        %1052 = vmatmul.f32.gmra.mxu0 %v1027
        %v1053 = vpop.f32.mrf.mxu0
        %v1054 = vadd.f32 0.0, %v1053
        %1055 = vdwg.mxu0
        %v1056 = vmul.f32 %v1051, 0.35355338
        %v1057 = vmul.f32 %v1054, 0.35355338
        %v1058 = vsel %vm624, %v1056, -1e+09
        %v1059 = vsel %vm624, %v1057, -1e+09
        %v1060 = vsel %vm807, %v1058, -inf
        %1061 = vmax.xlane.f32.xlu0 %v1060
        %v1062 = vpop.xlane.xlu0 %1061
        %v1063 = vsel %vm807, %v1059, -inf
        %1064 = vmax.xlane.f32.xlu0 %v1063
        %v1065 = vpop.xlane.xlu0 %1064
        %v1066 = vsub.f32 %v1058, %v1062
        %v1067 = vsub.f32 %v1059, %v1065
        %v1068 = vmul.f32 %v1066, 1.442695
        %v1069 = vpow.pop %v1068
        %v1070 = vmul.f32 %v1067, 1.442695
        %v1071 = vpow.pop %v1070
        %v1072 = vsel %vm807, %v1069, 0.0
        %1073 = vadd.xlane.f32.xlu0 %v1072
        %v1074 = vpop.xlane.xlu0 %1073
        %v1075 = vsel %vm807, %v1071, 0.0
        %1076 = vadd.xlane.f32.xlu0 %v1075
        %v1077 = vpop.xlane.xlu0 %1076
        %v1078 = vrcp.pop %v1074
        %v1079 = vmul.f32 %v1074, %v1078
        %v1080 = vsub.f32 1.0, %v1079
        %v1081 = vmul.f32 %v1078, %v1080
        %v1082 = vadd.f32 %v1078, %v1081
        %vm1083 = vweird.f32 %v1074
        %vm1084 = vweird.f32 %v1078
        %vm1085 = vmor %vm1083, %vm1084
        %v1086 = vsel %vm1085, %v1078, %v1082
        %v1087 = vand.u32 2147483647, %v1074
        %vm1088 = vcmp.eq.f32.partialorder %v1087, 8.507059e+37
        %v1089 = vand.u32 %v1074, 2147483648
        %v1090 = vor.u32 1.1754944e-38, %v1089
        %v1091 = vsel %vm1088, %v1090, %v1086
        %v1092 = vmul.f32 %v1069, %v1091
        %v1093 = vrcp.pop %v1077
        %v1094 = vmul.f32 %v1077, %v1093
        %v1095 = vsub.f32 1.0, %v1094
        %v1096 = vmul.f32 %v1093, %v1095
        %v1097 = vadd.f32 %v1093, %v1096
        %vm1098 = vweird.f32 %v1077
        %vm1099 = vweird.f32 %v1093
        %vm1100 = vmor %vm1098, %vm1099
        %v1101 = vsel %vm1100, %v1093, %v1097
        %v1102 = vand.u32 2147483647, %v1077
        %vm1103 = vcmp.eq.f32.partialorder %v1102, 8.507059e+37
        %v1104 = vand.u32 %v1077, 2147483648
        %v1105 = vor.u32 1.1754944e-38, %v1104
        %v1106 = vsel %vm1103, %v1105, %v1101
        %v1107 = vmul.f32 %v1071, %v1106
        %1108 = vrot.lane.b32.xlu0 %v760, 48
        %v1109 = vpop.permute.xlu0 %1108
        %1110 = vrot.lane.b32.xlu0 %v763, 48
        %v1111 = vpop.permute.xlu0 %1110
        %v1115 = vsel %vm807, %v1092, 0
        %v1118 = vsel %vm807, %v1107, 0
        %1120 = vmatpush.msra.mxu0 0.0
        %1121 = vmatpush.msra.mxu0 0.0
        %1122 = vmatpush.msra.mxu0 0.0
        %1123 = vmatpush.msra.mxu0 0.0
        %1124 = vmatpush.msra.mxu0 0.0
        %1125 = vmatpush.msra.mxu0 0.0
        %1126 = vmatpush.msra.mxu0 0.0
        %1127 = vmatpush.msra.mxu0 0.0
        %1128 = vmatpush.msra.mxu0 0.0
        %1129 = vmatpush.msra.mxu0 0.0
        %1130 = vmatpush.msra.mxu0 0.0
        %1131 = vmatpush.msra.mxu0 0.0
        %1132 = vmatpush.msra.mxu0 0.0
        %1133 = vmatpush.msra.mxu0 0.0
        %1134 = vmatpush.msra.mxu0 %v1111
        %1135 = vmatpush.msra.mxu0 %v1109
        %1136 = vmatmul.f32.gmra.mxu0 %v1115
        %v1137 = vpop.f32.mrf.mxu0
        %v1138 = vadd.f32 0.0, %v1137
        %1139 = vmatmul.f32.gmra.mxu0 %v1118
        %v1140 = vpop.f32.mrf.mxu0
        %v1141 = vadd.f32 0.0, %v1140
        %1142 = vdwg.mxu0
        %1143 = vrot.lane.b32.xlu0 %v760, 104
        %v1144 = vpop.permute.xlu0 %1143
        %1145 = vrot.lane.b32.xlu0 %v763, 104
        %v1146 = vpop.permute.xlu0 %1145
        %1147 = vrot.lane.b32.xlu0 %v760, 72
        %v1148 = vpop.permute.xlu0 %1147
        %1149 = vrot.lane.b32.xlu0 %v763, 72
        %v1150 = vpop.permute.xlu0 %1149
        %v1151 = vsel %vm771, %v1144, 0
        %v1153 = vsel %vm771, %v1146, 0
        %v1155 = vsel %vm771, %v1148, 0
        %v1157 = vsel %vm771, %v1150, 0
        %1159 = vmatpush.xpose.msra.mxu0 0.0
        %1160 = vmatpush.xpose.msra.mxu0 0.0
        %1161 = vmatpush.xpose.msra.mxu0 0.0
        %1162 = vmatpush.xpose.msra.mxu0 0.0
        %1163 = vmatpush.xpose.msra.mxu0 0.0
        %1164 = vmatpush.xpose.msra.mxu0 0.0
        %1165 = vmatpush.xpose.msra.mxu0 0.0
        %1166 = vmatpush.xpose.msra.mxu0 0.0
        %1167 = vmatpush.xpose.msra.mxu0 0.0
        %1168 = vmatpush.xpose.msra.mxu0 0.0
        %1169 = vmatpush.xpose.msra.mxu0 0.0
        %1170 = vmatpush.xpose.msra.mxu0 0.0
        %1171 = vmatpush.xpose.msra.mxu0 0.0
        %1172 = vmatpush.xpose.msra.mxu0 0.0
        %1173 = vmatpush.xpose.msra.mxu0 %v1157
        %1174 = vmatpush.xpose.msra.mxu0 %v1155
        %1175 = vmatmul.f32.gmra.mxu0 %v1151
        %v1176 = vpop.f32.mrf.mxu0
        %v1177 = vadd.f32 0.0, %v1176
        %1178 = vmatmul.f32.gmra.mxu0 %v1153
        %v1179 = vpop.f32.mrf.mxu0
        %v1180 = vadd.f32 0.0, %v1179
        %1181 = vdwg.mxu0
        %v1182 = vmul.f32 %v1177, 0.35355338
        %v1183 = vmul.f32 %v1180, 0.35355338
        %v1184 = vsel %vm624, %v1182, -1e+09
        %v1185 = vsel %vm624, %v1183, -1e+09
        %v1186 = vsel %vm807, %v1184, -inf
        %1187 = vmax.xlane.f32.xlu0 %v1186
        %v1188 = vpop.xlane.xlu0 %1187
        %v1189 = vsel %vm807, %v1185, -inf
        %1190 = vmax.xlane.f32.xlu0 %v1189
        %v1191 = vpop.xlane.xlu0 %1190
        %v1192 = vsub.f32 %v1184, %v1188
        %v1193 = vsub.f32 %v1185, %v1191
        %v1194 = vmul.f32 %v1192, 1.442695
        %v1195 = vpow.pop %v1194
        %v1196 = vmul.f32 %v1193, 1.442695
        %v1197 = vpow.pop %v1196
        %v1198 = vsel %vm807, %v1195, 0.0
        %1199 = vadd.xlane.f32.xlu0 %v1198
        %v1200 = vpop.xlane.xlu0 %1199
        %v1201 = vsel %vm807, %v1197, 0.0
        %1202 = vadd.xlane.f32.xlu0 %v1201
        %v1203 = vpop.xlane.xlu0 %1202
        %v1204 = vrcp.pop %v1200
        %v1205 = vmul.f32 %v1200, %v1204
        %v1206 = vsub.f32 1.0, %v1205
        %v1207 = vmul.f32 %v1204, %v1206
        %v1208 = vadd.f32 %v1204, %v1207
        %vm1209 = vweird.f32 %v1200
        %vm1210 = vweird.f32 %v1204
        %vm1211 = vmor %vm1209, %vm1210
        %v1212 = vsel %vm1211, %v1204, %v1208
        %v1213 = vand.u32 2147483647, %v1200
        %vm1214 = vcmp.eq.f32.partialorder %v1213, 8.507059e+37
        %v1215 = vand.u32 %v1200, 2147483648
        %v1216 = vor.u32 1.1754944e-38, %v1215
        %v1217 = vsel %vm1214, %v1216, %v1212
        %v1218 = vmul.f32 %v1195, %v1217
        %v1219 = vrcp.pop %v1203
        %v1220 = vmul.f32 %v1203, %v1219
        %v1221 = vsub.f32 1.0, %v1220
        %v1222 = vmul.f32 %v1219, %v1221
        %v1223 = vadd.f32 %v1219, %v1222
        %vm1224 = vweird.f32 %v1203
        %vm1225 = vweird.f32 %v1219
        %vm1226 = vmor %vm1224, %vm1225
        %v1227 = vsel %vm1226, %v1219, %v1223
        %v1228 = vand.u32 2147483647, %v1203
        %vm1229 = vcmp.eq.f32.partialorder %v1228, 8.507059e+37
        %v1230 = vand.u32 %v1203, 2147483648
        %v1231 = vor.u32 1.1754944e-38, %v1230
        %v1232 = vsel %vm1229, %v1231, %v1227
        %v1233 = vmul.f32 %v1197, %v1232
        %1234 = vrot.lane.b32.xlu0 %v760, 40
        %v1235 = vpop.permute.xlu0 %1234
        %1236 = vrot.lane.b32.xlu0 %v763, 40
        %v1237 = vpop.permute.xlu0 %1236
        %v1241 = vsel %vm807, %v1218, 0
        %v1244 = vsel %vm807, %v1233, 0
        %1246 = vmatpush.msra.mxu0 0.0
        %1247 = vmatpush.msra.mxu0 0.0
        %1248 = vmatpush.msra.mxu0 0.0
        %1249 = vmatpush.msra.mxu0 0.0
        %1250 = vmatpush.msra.mxu0 0.0
        %1251 = vmatpush.msra.mxu0 0.0
        %1252 = vmatpush.msra.mxu0 0.0
        %1253 = vmatpush.msra.mxu0 0.0
        %1254 = vmatpush.msra.mxu0 0.0
        %1255 = vmatpush.msra.mxu0 0.0
        %1256 = vmatpush.msra.mxu0 0.0
        %1257 = vmatpush.msra.mxu0 0.0
        %1258 = vmatpush.msra.mxu0 0.0
        %1259 = vmatpush.msra.mxu0 0.0
        %1260 = vmatpush.msra.mxu0 %v1237
        %1261 = vmatpush.msra.mxu0 %v1235
        %1262 = vmatmul.f32.gmra.mxu0 %v1241
        %v1263 = vpop.f32.mrf.mxu0
        %v1264 = vadd.f32 0.0, %v1263
        %1265 = vmatmul.f32.gmra.mxu0 %v1244
        %v1266 = vpop.f32.mrf.mxu0
        %v1267 = vadd.f32 0.0, %v1266
        %1268 = vdwg.mxu0
        %1271 = vrot.lane.b32.xlu0 %v1012, 8
        %v1272 = vpop.permute.xlu0 %1271
        %1273 = vrot.lane.b32.xlu0 %v1015, 8
        %v1274 = vpop.permute.xlu0 %1273
        %1279 = vrot.lane.b32.xlu0 %v1138, 16
        %v1280 = vpop.permute.xlu0 %1279
        %1281 = vrot.lane.b32.xlu0 %v1141, 16
        %v1282 = vpop.permute.xlu0 %1281
        %1287 = vrot.lane.b32.xlu0 %v1264, 24
        %v1288 = vpop.permute.xlu0 %1287
        %1289 = vrot.lane.b32.xlu0 %v1267, 24
        %v1290 = vpop.permute.xlu0 %1289
        %v1293 = vsel %vm771, %v886, %v1272
        %v1294 = vsel %vm771, %v889, %v1274
        %v1295 = vsel %vm807, %v1293, %v1280
        %v1296 = vsel %vm807, %v1294, %v1282
        %vm1297 = vcmask 195584
        %v1298 = vsel %vm1297, %v1295, %v1288
        %v1299 = vsel %vm1297, %v1296, %v1290
        %v1300 = vld [vmem:[%s4] sm:$0xff]
        %v1301 = vld [vmem:[%s4 + $0x8] sm:$0xff]
        %v1302 = vld [vmem:[%s4 + $0x10] sm:$0xff]
        %v1303 = vld [vmem:[%s4 + $0x18] sm:$0xff]
        %v1304 = vld [vmem:[#allocation7] sm:$0x1]
        %v1306 = vperm.slane %v1304, 0
        %v1309 = vsel %vm627, %v1298, 0
        %v1312 = vsel %vm627, %v1299, 0
        %1314 = vmatpush.msra.mxu0 0.0
        %1315 = vmatpush.msra.mxu0 0.0
        %1316 = vmatpush.msra.mxu0 0.0
        %1317 = vmatpush.msra.mxu0 0.0
        %1318 = vmatpush.msra.mxu0 0.0
        %1319 = vmatpush.msra.mxu0 0.0
        %1320 = vmatpush.msra.mxu0 0.0
        %1321 = vmatpush.msra.mxu0 0.0
        %1322 = vmatpush.msra.mxu0 0.0
        %1323 = vmatpush.msra.mxu0 0.0
        %1324 = vmatpush.msra.mxu0 0.0
        %1325 = vmatpush.msra.mxu0 0.0
        %1326 = vmatpush.msra.mxu0 %v1303
        %1327 = vmatpush.msra.mxu0 %v1302
        %1328 = vmatpush.msra.mxu0 %v1301
        %1329 = vmatpush.msra.mxu0 %v1300
        %1330 = vmatmul.f32.gmra.mxu0 %v1309
        %v1331 = vpop.f32.mrf.mxu0
        %v1332 = vadd.f32 %v1306, %v1331
        %1333 = vmatmul.f32.gmra.mxu0 %v1312
        %v1334 = vpop.f32.mrf.mxu0
        %v1335 = vadd.f32 %v1306, %v1334
        %1336 = vdwg.mxu0
        %v1337 = vadd.f32 %v618, %v1332
        %v1338 = vadd.f32 %v619, %v1335
        %v1339 = vld [vmem:[%s12] sm:$0x1]
        %v1340 = vld [vmem:[#allocation14] sm:$0x1]
        %v1341 = vsel %vm627, %v1337, 0.0
        %1342 = vadd.xlane.f32.xlu0 %v1341
        %v1343 = vpop.xlane.xlu0 %1342
        %v1344 = vsel %vm627, %v1338, 0.0
        %1345 = vadd.xlane.f32.xlu0 %v1344
        %v1346 = vpop.xlane.xlu0 %1345
        %v1347 = vmul.f32 %v1343, %v640
        %v1348 = vmul.f32 %v1346, %v640
        %v1349 = vsub.f32 %v1337, %v1347
        %v1350 = vsub.f32 %v1338, %v1348
        %v1351 = vmul.f32 %v1349, %v1349
        %v1352 = vmul.f32 %v1350, %v1350
        %v1353 = vsel %vm627, %v1351, 0.0
        %1354 = vadd.xlane.f32.xlu0 %v1353
        %v1355 = vpop.xlane.xlu0 %1354
        %v1356 = vsel %vm627, %v1352, 0.0
        %1357 = vadd.xlane.f32.xlu0 %v1356
        %v1358 = vpop.xlane.xlu0 %1357
        %v1359 = vmul.f32 %v1355, %v659
        %v1360 = vmul.f32 %v1358, %v659
        %v1362 = vperm.slane %v1339, 0
        %v1364 = vmul.f32 %v1362, %v1349
        %v1365 = vmul.f32 %v1362, %v1350
        %v1366 = vrsqrt.pop %v1359
        %v1367 = vmul.f32 %v1366, %v1359
        %v1368 = vmul.f32 %v1367, %v1366
        %v1369 = vmul.f32 0.5, %v1368
        %v1370 = vsub.f32 1.5, %v1369
        %v1371 = vmul.f32 %v1366, %v1370
        %v1372 = vmul.f32 %v1359, %v1371
        %vm1373 = vcmp.eq.f32.partialorder %v1359, inf
        %v1374 = vsel %vm1373, %v1359, %v1372
        %vm1375 = vcmp.eq.f32.partialorder %v1359, 0.0
        %v1376 = vand.u32 %v1359, 2147483648
        %v1377 = vsel %vm1375, %v1376, %v1374
        %v1378 = vrsqrt.pop %v1360
        %v1379 = vmul.f32 %v1378, %v1360
        %v1380 = vmul.f32 %v1379, %v1378
        %v1381 = vmul.f32 0.5, %v1380
        %v1382 = vsub.f32 1.5, %v1381
        %v1383 = vmul.f32 %v1378, %v1382
        %v1384 = vmul.f32 %v1360, %v1383
        %vm1385 = vcmp.eq.f32.partialorder %v1360, inf
        %v1386 = vsel %vm1385, %v1360, %v1384
        %vm1387 = vcmp.eq.f32.partialorder %v1360, 0.0
        %v1388 = vand.u32 %v1360, 2147483648
        %v1389 = vsel %vm1387, %v1388, %v1386
        %v1390 = vadd.f32 %v1377, 1e-06
        %v1391 = vadd.f32 %v1389, 1e-06
        %v1392 = vrcp.pop %v1390
        %v1393 = vmul.f32 %v1390, %v1392
        %v1394 = vsub.f32 1.0, %v1393
        %v1395 = vmul.f32 %v1392, %v1394
        %v1396 = vadd.f32 %v1392, %v1395
        %vm1397 = vweird.f32 %v1390
        %vm1398 = vweird.f32 %v1392
        %vm1399 = vmor %vm1397, %vm1398
        %v1400 = vsel %vm1399, %v1392, %v1396
        %v1401 = vand.u32 2147483647, %v1390
        %vm1402 = vcmp.eq.f32.partialorder %v1401, 8.507059e+37
        %v1403 = vand.u32 %v1390, 2147483648
        %v1404 = vor.u32 1.1754944e-38, %v1403
        %v1405 = vsel %vm1402, %v1404, %v1400
        %v1406 = vmul.f32 %v1364, %v1405
        %v1407 = vrcp.pop %v1391
        %v1408 = vmul.f32 %v1391, %v1407
        %v1409 = vsub.f32 1.0, %v1408
        %v1410 = vmul.f32 %v1407, %v1409
        %v1411 = vadd.f32 %v1407, %v1410
        %vm1412 = vweird.f32 %v1391
        %vm1413 = vweird.f32 %v1407
        %vm1414 = vmor %vm1412, %vm1413
        %v1415 = vsel %vm1414, %v1407, %v1411
        %v1416 = vand.u32 2147483647, %v1391
        %vm1417 = vcmp.eq.f32.partialorder %v1416, 8.507059e+37
        %v1418 = vand.u32 %v1391, 2147483648
        %v1419 = vor.u32 1.1754944e-38, %v1418
        %v1420 = vsel %vm1417, %v1419, %v1415
        %v1421 = vmul.f32 %v1365, %v1420
        %v1423 = vperm.slane %v1340, 0
        %v1425 = vadd.f32 %v1406, %v1423
        %v1426 = vadd.f32 %v1421, %v1423
        %v1427 = vld [vmem:[%s6] sm:$0xff]
        %v1428 = vld [vmem:[%s6 + $0x8] sm:$0xff]
        %v1429 = vld [vmem:[%s6 + $0x10] sm:$0xff]
        %v1430 = vld [vmem:[%s6 + $0x18] sm:$0xff]
        %v1431 = vld [vmem:[#allocation8] sm:$0x1]
        %v1433 = vperm.slane %v1431, 0
        %v1436 = vsel %vm627, %v1425, 0
        %v1439 = vsel %vm627, %v1426, 0
        %1441 = vmatpush.msra.mxu0 0.0
        %1442 = vmatpush.msra.mxu0 0.0
        %1443 = vmatpush.msra.mxu0 0.0
        %1444 = vmatpush.msra.mxu0 0.0
        %1445 = vmatpush.msra.mxu0 0.0
        %1446 = vmatpush.msra.mxu0 0.0
        %1447 = vmatpush.msra.mxu0 0.0
        %1448 = vmatpush.msra.mxu0 0.0
        %1449 = vmatpush.msra.mxu0 0.0
        %1450 = vmatpush.msra.mxu0 0.0
        %1451 = vmatpush.msra.mxu0 0.0
        %1452 = vmatpush.msra.mxu0 0.0
        %1453 = vmatpush.msra.mxu0 %v1430
        %1454 = vmatpush.msra.mxu0 %v1429
        %1455 = vmatpush.msra.mxu0 %v1428
        %1456 = vmatpush.msra.mxu0 %v1427
        %1457 = vmatmul.f32.gmra.mxu0 %v1436
        %v1458 = vpop.f32.mrf.mxu0
        %v1459 = vadd.f32 %v1433, %v1458
        %1460 = vmatmul.f32.gmra.mxu0 %v1439
        %v1461 = vpop.f32.mrf.mxu0
        %v1462 = vadd.f32 %v1433, %v1461
        %1463 = vdwg.mxu0
        %v1464 = vmax.f32 %v1459, 0.0
        %v1465 = vmax.f32 %v1462, 0.0
        %v1466 = vld [vmem:[%s8] sm:$0xff]
        %v1467 = vld [vmem:[%s8 + $0x8] sm:$0xff]
        %v1468 = vld [vmem:[%s8 + $0x10] sm:$0xff]
        %v1469 = vld [vmem:[%s8 + $0x18] sm:$0xff]
        %v1470 = vld [vmem:[%s8 + $0x20] sm:$0xff]
        %v1471 = vld [vmem:[%s8 + $0x28] sm:$0xff]
        %v1472 = vld [vmem:[%s8 + $0x30] sm:$0xff]
        %v1473 = vld [vmem:[%s8 + $0x38] sm:$0xff]
        %v1474 = vld [vmem:[#allocation10] sm:$0x1]
        %v1476 = vperm.slane %v1474, 0
        %vm1478 = vcmask 523264
        %v1480 = vsel %vm1478, %v1464, 0
        %v1483 = vsel %vm1478, %v1465, 0
        %1485 = vmatpush.msra.mxu0 0.0
        %1486 = vmatpush.msra.mxu0 0.0
        %1487 = vmatpush.msra.mxu0 0.0
        %1488 = vmatpush.msra.mxu0 0.0
        %1489 = vmatpush.msra.mxu0 0.0
        %1490 = vmatpush.msra.mxu0 0.0
        %1491 = vmatpush.msra.mxu0 0.0
        %1492 = vmatpush.msra.mxu0 0.0
        %1493 = vmatpush.msra.mxu0 %v1473
        %1494 = vmatpush.msra.mxu0 %v1472
        %1495 = vmatpush.msra.mxu0 %v1471
        %1496 = vmatpush.msra.mxu0 %v1470
        %1497 = vmatpush.msra.mxu0 %v1469
        %1498 = vmatpush.msra.mxu0 %v1468
        %1499 = vmatpush.msra.mxu0 %v1467
        %1500 = vmatpush.msra.mxu0 %v1466
        %1501 = vmatmul.f32.gmra.mxu0 %v1480
        %v1502 = vpop.f32.mrf.mxu0
        %v1503 = vadd.f32 %v1476, %v1502
        %1504 = vmatmul.f32.gmra.mxu0 %v1483
        %v1505 = vpop.f32.mrf.mxu0
        %v1506 = vadd.f32 %v1476, %v1505
        %1507 = vdwg.mxu0
        %v1508 = vadd.f32 %v1337, %v1503
        %v1509 = vadd.f32 %v1338, %v1506
        %s1510 = scalar_lea.vmem [#allocation11], 1
        %v1511 = vld [vmem:[%s1510] sm:$0x1]
        %s1512 = scalar_lea.vmem [#allocation13], 1
        %v1513 = vld [vmem:[%s1512] sm:$0x1]
        %v1514 = vsel %vm627, %v1508, 0.0
        %1515 = vadd.xlane.f32.xlu0 %v1514
        %v1516 = vpop.xlane.xlu0 %1515
        %v1517 = vsel %vm627, %v1509, 0.0
        %1518 = vadd.xlane.f32.xlu0 %v1517
        %v1519 = vpop.xlane.xlu0 %1518
        %v1520 = vmul.f32 %v1516, %v640
        %v1521 = vmul.f32 %v1519, %v640
        %v1522 = vsub.f32 %v1508, %v1520
        %v1523 = vsub.f32 %v1509, %v1521
        %v1524 = vmul.f32 %v1522, %v1522
        %v1525 = vmul.f32 %v1523, %v1523
        %v1526 = vsel %vm627, %v1524, 0.0
        %1527 = vadd.xlane.f32.xlu0 %v1526
        %v1528 = vpop.xlane.xlu0 %1527
        %v1529 = vsel %vm627, %v1525, 0.0
        %1530 = vadd.xlane.f32.xlu0 %v1529
        %v1531 = vpop.xlane.xlu0 %1530
        %v1532 = vmul.f32 %v1528, %v659
        %v1533 = vmul.f32 %v1531, %v659
        %v1535 = vperm.slane %v1511, 0
        %v1537 = vmul.f32 %v1535, %v1522
        %v1538 = vmul.f32 %v1535, %v1523
        %v1539 = vrsqrt.pop %v1532
        %v1540 = vmul.f32 %v1539, %v1532
        %v1541 = vmul.f32 %v1540, %v1539
        %v1542 = vmul.f32 0.5, %v1541
        %v1543 = vsub.f32 1.5, %v1542
        %v1544 = vmul.f32 %v1539, %v1543
        %v1545 = vmul.f32 %v1532, %v1544
        %vm1546 = vcmp.eq.f32.partialorder %v1532, inf
        %v1547 = vsel %vm1546, %v1532, %v1545
        %vm1548 = vcmp.eq.f32.partialorder %v1532, 0.0
        %v1549 = vand.u32 %v1532, 2147483648
        %v1550 = vsel %vm1548, %v1549, %v1547
        %v1551 = vrsqrt.pop %v1533
        %v1552 = vmul.f32 %v1551, %v1533
        %v1553 = vmul.f32 %v1552, %v1551
        %v1554 = vmul.f32 0.5, %v1553
        %v1555 = vsub.f32 1.5, %v1554
        %v1556 = vmul.f32 %v1551, %v1555
        %v1557 = vmul.f32 %v1533, %v1556
        %vm1558 = vcmp.eq.f32.partialorder %v1533, inf
        %v1559 = vsel %vm1558, %v1533, %v1557
        %vm1560 = vcmp.eq.f32.partialorder %v1533, 0.0
        %v1561 = vand.u32 %v1533, 2147483648
        %v1562 = vsel %vm1560, %v1561, %v1559
        %v1563 = vadd.f32 %v1550, 1e-06
        %v1564 = vadd.f32 %v1562, 1e-06
        %v1565 = vrcp.pop %v1563
        %v1566 = vmul.f32 %v1563, %v1565
        %v1567 = vsub.f32 1.0, %v1566
        %v1568 = vmul.f32 %v1565, %v1567
        %v1569 = vadd.f32 %v1565, %v1568
        %vm1570 = vweird.f32 %v1563
        %vm1571 = vweird.f32 %v1565
        %vm1572 = vmor %vm1570, %vm1571
        %v1573 = vsel %vm1572, %v1565, %v1569
        %v1574 = vand.u32 2147483647, %v1563
        %vm1575 = vcmp.eq.f32.partialorder %v1574, 8.507059e+37
        %v1576 = vand.u32 %v1563, 2147483648
        %v1577 = vor.u32 1.1754944e-38, %v1576
        %v1578 = vsel %vm1575, %v1577, %v1573
        %v1579 = vmul.f32 %v1537, %v1578
        %v1580 = vrcp.pop %v1564
        %v1581 = vmul.f32 %v1564, %v1580
        %v1582 = vsub.f32 1.0, %v1581
        %v1583 = vmul.f32 %v1580, %v1582
        %v1584 = vadd.f32 %v1580, %v1583
        %vm1585 = vweird.f32 %v1564
        %vm1586 = vweird.f32 %v1580
        %vm1587 = vmor %vm1585, %vm1586
        %v1588 = vsel %vm1587, %v1580, %v1584
        %v1589 = vand.u32 2147483647, %v1564
        %vm1590 = vcmp.eq.f32.partialorder %v1589, 8.507059e+37
        %v1591 = vand.u32 %v1564, 2147483648
        %v1592 = vor.u32 1.1754944e-38, %v1591
        %v1593 = vsel %vm1590, %v1592, %v1588
        %v1594 = vmul.f32 %v1538, %v1593
        %v1596 = vperm.slane %v1513, 0
        %v1598 = vadd.f32 %v1579, %v1596
        %v1599 = vadd.f32 %v1594, %v1596
        %s1600 = scalar_lea.vmem %s2, 32
        %v1601 = vld [vmem:[%s1600] sm:$0xff]
        %v1602 = vld [vmem:[%s1600 + $0x8] sm:$0xff]
        %v1603 = vld [vmem:[%s1600 + $0x10] sm:$0xff]
        %v1604 = vld [vmem:[%s1600 + $0x18] sm:$0xff]
        %s1605 = scalar_lea.vmem [#allocation5], 1
        %v1606 = vld [vmem:[%s1605] sm:$0x1]
        %v1608 = vperm.slane %v1606, 0
        %v1611 = vsel %vm627, %v1598, 0
        %v1614 = vsel %vm627, %v1599, 0
        %1616 = vmatpush.msra.mxu0 0.0
        %1617 = vmatpush.msra.mxu0 0.0
        %1618 = vmatpush.msra.mxu0 0.0
        %1619 = vmatpush.msra.mxu0 0.0
        %1620 = vmatpush.msra.mxu0 0.0
        %1621 = vmatpush.msra.mxu0 0.0
        %1622 = vmatpush.msra.mxu0 0.0
        %1623 = vmatpush.msra.mxu0 0.0
        %1624 = vmatpush.msra.mxu0 0.0
        %1625 = vmatpush.msra.mxu0 0.0
        %1626 = vmatpush.msra.mxu0 0.0
        %1627 = vmatpush.msra.mxu0 0.0
        %1628 = vmatpush.msra.mxu0 %v1604
        %1629 = vmatpush.msra.mxu0 %v1603
        %1630 = vmatpush.msra.mxu0 %v1602
        %1631 = vmatpush.msra.mxu0 %v1601
        %1632 = vmatmul.f32.gmra.mxu0 %v1611
        %v1633 = vpop.f32.mrf.mxu0
        %v1634 = vadd.f32 %v1608, %v1633
        %1635 = vmatmul.f32.gmra.mxu0 %v1614
        %v1636 = vpop.f32.mrf.mxu0
        %v1637 = vadd.f32 %v1608, %v1636
        %1638 = vdwg.mxu0
        %1641 = vrot.lane.b32.xlu0 %v1634, 96
        %v1642 = vpop.permute.xlu0 %1641
        %1643 = vrot.lane.b32.xlu0 %v1637, 96
        %v1644 = vpop.permute.xlu0 %1643
        %v1645 = vsel %vm771, %v1634, 0
        %v1647 = vsel %vm771, %v1637, 0
        %v1649 = vsel %vm771, %v1642, 0
        %v1651 = vsel %vm771, %v1644, 0
        %1653 = vmatpush.xpose.msra.mxu0 0.0
        %1654 = vmatpush.xpose.msra.mxu0 0.0
        %1655 = vmatpush.xpose.msra.mxu0 0.0
        %1656 = vmatpush.xpose.msra.mxu0 0.0
        %1657 = vmatpush.xpose.msra.mxu0 0.0
        %1658 = vmatpush.xpose.msra.mxu0 0.0
        %1659 = vmatpush.xpose.msra.mxu0 0.0
        %1660 = vmatpush.xpose.msra.mxu0 0.0
        %1661 = vmatpush.xpose.msra.mxu0 0.0
        %1662 = vmatpush.xpose.msra.mxu0 0.0
        %1663 = vmatpush.xpose.msra.mxu0 0.0
        %1664 = vmatpush.xpose.msra.mxu0 0.0
        %1665 = vmatpush.xpose.msra.mxu0 0.0
        %1666 = vmatpush.xpose.msra.mxu0 0.0
        %1667 = vmatpush.xpose.msra.mxu0 %v1651
        %1668 = vmatpush.xpose.msra.mxu0 %v1649
        %1669 = vmatmul.f32.gmra.mxu0 %v1645
        %v1670 = vpop.f32.mrf.mxu0
        %v1671 = vadd.f32 0.0, %v1670
        %1672 = vmatmul.f32.gmra.mxu0 %v1647
        %v1673 = vpop.f32.mrf.mxu0
        %v1674 = vadd.f32 0.0, %v1673
        %1675 = vdwg.mxu0
        %v1676 = vmul.f32 %v1671, 0.35355338
        %v1677 = vmul.f32 %v1674, 0.35355338
        %v1678 = vsel %vm624, %v1676, -1e+09
        %v1679 = vsel %vm624, %v1677, -1e+09
        %v1680 = vsel %vm807, %v1678, -inf
        %1681 = vmax.xlane.f32.xlu0 %v1680
        %v1682 = vpop.xlane.xlu0 %1681
        %v1683 = vsel %vm807, %v1679, -inf
        %1684 = vmax.xlane.f32.xlu0 %v1683
        %v1685 = vpop.xlane.xlu0 %1684
        %v1686 = vsub.f32 %v1678, %v1682
        %v1687 = vsub.f32 %v1679, %v1685
        %v1688 = vmul.f32 %v1686, 1.442695
        %v1689 = vpow.pop %v1688
        %v1690 = vmul.f32 %v1687, 1.442695
        %v1691 = vpow.pop %v1690
        %v1692 = vsel %vm807, %v1689, 0.0
        %1693 = vadd.xlane.f32.xlu0 %v1692
        %v1694 = vpop.xlane.xlu0 %1693
        %v1695 = vsel %vm807, %v1691, 0.0
        %1696 = vadd.xlane.f32.xlu0 %v1695
        %v1697 = vpop.xlane.xlu0 %1696
        %v1698 = vrcp.pop %v1694
        %v1699 = vmul.f32 %v1694, %v1698
        %v1700 = vsub.f32 1.0, %v1699
        %v1701 = vmul.f32 %v1698, %v1700
        %v1702 = vadd.f32 %v1698, %v1701
        %vm1703 = vweird.f32 %v1694
        %vm1704 = vweird.f32 %v1698
        %vm1705 = vmor %vm1703, %vm1704
        %v1706 = vsel %vm1705, %v1698, %v1702
        %v1707 = vand.u32 2147483647, %v1694
        %vm1708 = vcmp.eq.f32.partialorder %v1707, 8.507059e+37
        %v1709 = vand.u32 %v1694, 2147483648
        %v1710 = vor.u32 1.1754944e-38, %v1709
        %v1711 = vsel %vm1708, %v1710, %v1706
        %v1712 = vmul.f32 %v1689, %v1711
        %v1713 = vrcp.pop %v1697
        %v1714 = vmul.f32 %v1697, %v1713
        %v1715 = vsub.f32 1.0, %v1714
        %v1716 = vmul.f32 %v1713, %v1715
        %v1717 = vadd.f32 %v1713, %v1716
        %vm1718 = vweird.f32 %v1697
        %vm1719 = vweird.f32 %v1713
        %vm1720 = vmor %vm1718, %vm1719
        %v1721 = vsel %vm1720, %v1713, %v1717
        %v1722 = vand.u32 2147483647, %v1697
        %vm1723 = vcmp.eq.f32.partialorder %v1722, 8.507059e+37
        %v1724 = vand.u32 %v1697, 2147483648
        %v1725 = vor.u32 1.1754944e-38, %v1724
        %v1726 = vsel %vm1723, %v1725, %v1721
        %v1727 = vmul.f32 %v1691, %v1726
        %1728 = vrot.lane.b32.xlu0 %v1634, 64
        %v1729 = vpop.permute.xlu0 %1728
        %1730 = vrot.lane.b32.xlu0 %v1637, 64
        %v1731 = vpop.permute.xlu0 %1730
        %v1735 = vsel %vm807, %v1712, 0
        %v1738 = vsel %vm807, %v1727, 0
        %1740 = vmatpush.msra.mxu0 0.0
        %1741 = vmatpush.msra.mxu0 0.0
        %1742 = vmatpush.msra.mxu0 0.0
        %1743 = vmatpush.msra.mxu0 0.0
        %1744 = vmatpush.msra.mxu0 0.0
        %1745 = vmatpush.msra.mxu0 0.0
        %1746 = vmatpush.msra.mxu0 0.0
        %1747 = vmatpush.msra.mxu0 0.0
        %1748 = vmatpush.msra.mxu0 0.0
        %1749 = vmatpush.msra.mxu0 0.0
        %1750 = vmatpush.msra.mxu0 0.0
        %1751 = vmatpush.msra.mxu0 0.0
        %1752 = vmatpush.msra.mxu0 0.0
        %1753 = vmatpush.msra.mxu0 0.0
        %1754 = vmatpush.msra.mxu0 %v1731
        %1755 = vmatpush.msra.mxu0 %v1729
        %1756 = vmatmul.f32.gmra.mxu0 %v1735
        %v1757 = vpop.f32.mrf.mxu0
        %v1758 = vadd.f32 0.0, %v1757
        %1759 = vmatmul.f32.gmra.mxu0 %v1738
        %v1760 = vpop.f32.mrf.mxu0
        %v1761 = vadd.f32 0.0, %v1760
        %1762 = vdwg.mxu0
        %1763 = vrot.lane.b32.xlu0 %v1634, 120
        %v1764 = vpop.permute.xlu0 %1763
        %1765 = vrot.lane.b32.xlu0 %v1637, 120
        %v1766 = vpop.permute.xlu0 %1765
        %1767 = vrot.lane.b32.xlu0 %v1634, 88
        %v1768 = vpop.permute.xlu0 %1767
        %1769 = vrot.lane.b32.xlu0 %v1637, 88
        %v1770 = vpop.permute.xlu0 %1769
        %v1771 = vsel %vm771, %v1764, 0
        %v1773 = vsel %vm771, %v1766, 0
        %v1775 = vsel %vm771, %v1768, 0
        %v1777 = vsel %vm771, %v1770, 0
        %1779 = vmatpush.xpose.msra.mxu0 0.0
        %1780 = vmatpush.xpose.msra.mxu0 0.0
        %1781 = vmatpush.xpose.msra.mxu0 0.0
        %1782 = vmatpush.xpose.msra.mxu0 0.0
        %1783 = vmatpush.xpose.msra.mxu0 0.0
        %1784 = vmatpush.xpose.msra.mxu0 0.0
        %1785 = vmatpush.xpose.msra.mxu0 0.0
        %1786 = vmatpush.xpose.msra.mxu0 0.0
        %1787 = vmatpush.xpose.msra.mxu0 0.0
        %1788 = vmatpush.xpose.msra.mxu0 0.0
        %1789 = vmatpush.xpose.msra.mxu0 0.0
        %1790 = vmatpush.xpose.msra.mxu0 0.0
        %1791 = vmatpush.xpose.msra.mxu0 0.0
        %1792 = vmatpush.xpose.msra.mxu0 0.0
        %1793 = vmatpush.xpose.msra.mxu0 %v1777
        %1794 = vmatpush.xpose.msra.mxu0 %v1775
        %1795 = vmatmul.f32.gmra.mxu0 %v1771
        %v1796 = vpop.f32.mrf.mxu0
        %v1797 = vadd.f32 0.0, %v1796
        %1798 = vmatmul.f32.gmra.mxu0 %v1773
        %v1799 = vpop.f32.mrf.mxu0
        %v1800 = vadd.f32 0.0, %v1799
        %1801 = vdwg.mxu0
        %v1802 = vmul.f32 %v1797, 0.35355338
        %v1803 = vmul.f32 %v1800, 0.35355338
        %v1804 = vsel %vm624, %v1802, -1e+09
        %v1805 = vsel %vm624, %v1803, -1e+09
        %v1806 = vsel %vm807, %v1804, -inf
        %1807 = vmax.xlane.f32.xlu0 %v1806
        %v1808 = vpop.xlane.xlu0 %1807
        %v1809 = vsel %vm807, %v1805, -inf
        %1810 = vmax.xlane.f32.xlu0 %v1809
        %v1811 = vpop.xlane.xlu0 %1810
        %v1812 = vsub.f32 %v1804, %v1808
        %v1813 = vsub.f32 %v1805, %v1811
        %v1814 = vmul.f32 %v1812, 1.442695
        %v1815 = vpow.pop %v1814
        %v1816 = vmul.f32 %v1813, 1.442695
        %v1817 = vpow.pop %v1816
        %v1818 = vsel %vm807, %v1815, 0.0
        %1819 = vadd.xlane.f32.xlu0 %v1818
        %v1820 = vpop.xlane.xlu0 %1819
        %v1821 = vsel %vm807, %v1817, 0.0
        %1822 = vadd.xlane.f32.xlu0 %v1821
        %v1823 = vpop.xlane.xlu0 %1822
        %v1824 = vrcp.pop %v1820
        %v1825 = vmul.f32 %v1820, %v1824
        %v1826 = vsub.f32 1.0, %v1825
        %v1827 = vmul.f32 %v1824, %v1826
        %v1828 = vadd.f32 %v1824, %v1827
        %vm1829 = vweird.f32 %v1820
        %vm1830 = vweird.f32 %v1824
        %vm1831 = vmor %vm1829, %vm1830
        %v1832 = vsel %vm1831, %v1824, %v1828
        %v1833 = vand.u32 2147483647, %v1820
        %vm1834 = vcmp.eq.f32.partialorder %v1833, 8.507059e+37
        %v1835 = vand.u32 %v1820, 2147483648
        %v1836 = vor.u32 1.1754944e-38, %v1835
        %v1837 = vsel %vm1834, %v1836, %v1832
        %v1838 = vmul.f32 %v1815, %v1837
        %v1839 = vrcp.pop %v1823
        %v1840 = vmul.f32 %v1823, %v1839
        %v1841 = vsub.f32 1.0, %v1840
        %v1842 = vmul.f32 %v1839, %v1841
        %v1843 = vadd.f32 %v1839, %v1842
        %vm1844 = vweird.f32 %v1823
        %vm1845 = vweird.f32 %v1839
        %vm1846 = vmor %vm1844, %vm1845
        %v1847 = vsel %vm1846, %v1839, %v1843
        %v1848 = vand.u32 2147483647, %v1823
        %vm1849 = vcmp.eq.f32.partialorder %v1848, 8.507059e+37
        %v1850 = vand.u32 %v1823, 2147483648
        %v1851 = vor.u32 1.1754944e-38, %v1850
        %v1852 = vsel %vm1849, %v1851, %v1847
        %v1853 = vmul.f32 %v1817, %v1852
        %1854 = vrot.lane.b32.xlu0 %v1634, 56
        %v1855 = vpop.permute.xlu0 %1854
        %1856 = vrot.lane.b32.xlu0 %v1637, 56
        %v1857 = vpop.permute.xlu0 %1856
        %v1861 = vsel %vm807, %v1838, 0
        %v1864 = vsel %vm807, %v1853, 0
        %1866 = vmatpush.msra.mxu0 0.0
        %1867 = vmatpush.msra.mxu0 0.0
        %1868 = vmatpush.msra.mxu0 0.0
        %1869 = vmatpush.msra.mxu0 0.0
        %1870 = vmatpush.msra.mxu0 0.0
        %1871 = vmatpush.msra.mxu0 0.0
        %1872 = vmatpush.msra.mxu0 0.0
        %1873 = vmatpush.msra.mxu0 0.0
        %1874 = vmatpush.msra.mxu0 0.0
        %1875 = vmatpush.msra.mxu0 0.0
        %1876 = vmatpush.msra.mxu0 0.0
        %1877 = vmatpush.msra.mxu0 0.0
        %1878 = vmatpush.msra.mxu0 0.0
        %1879 = vmatpush.msra.mxu0 0.0
        %1880 = vmatpush.msra.mxu0 %v1857
        %1881 = vmatpush.msra.mxu0 %v1855
        %1882 = vmatmul.f32.gmra.mxu0 %v1861
        %v1883 = vpop.f32.mrf.mxu0
        %v1884 = vadd.f32 0.0, %v1883
        %1885 = vmatmul.f32.gmra.mxu0 %v1864
        %v1886 = vpop.f32.mrf.mxu0
        %v1887 = vadd.f32 0.0, %v1886
        %1888 = vdwg.mxu0
        %1889 = vrot.lane.b32.xlu0 %v1634, 112
        %v1890 = vpop.permute.xlu0 %1889
        %1891 = vrot.lane.b32.xlu0 %v1637, 112
        %v1892 = vpop.permute.xlu0 %1891
        %1893 = vrot.lane.b32.xlu0 %v1634, 80
        %v1894 = vpop.permute.xlu0 %1893
        %1895 = vrot.lane.b32.xlu0 %v1637, 80
        %v1896 = vpop.permute.xlu0 %1895
        %v1897 = vsel %vm771, %v1890, 0
        %v1899 = vsel %vm771, %v1892, 0
        %v1901 = vsel %vm771, %v1894, 0
        %v1903 = vsel %vm771, %v1896, 0
        %1905 = vmatpush.xpose.msra.mxu0 0.0
        %1906 = vmatpush.xpose.msra.mxu0 0.0
        %1907 = vmatpush.xpose.msra.mxu0 0.0
        %1908 = vmatpush.xpose.msra.mxu0 0.0
        %1909 = vmatpush.xpose.msra.mxu0 0.0
        %1910 = vmatpush.xpose.msra.mxu0 0.0
        %1911 = vmatpush.xpose.msra.mxu0 0.0
        %1912 = vmatpush.xpose.msra.mxu0 0.0
        %1913 = vmatpush.xpose.msra.mxu0 0.0
        %1914 = vmatpush.xpose.msra.mxu0 0.0
        %1915 = vmatpush.xpose.msra.mxu0 0.0
        %1916 = vmatpush.xpose.msra.mxu0 0.0
        %1917 = vmatpush.xpose.msra.mxu0 0.0
        %1918 = vmatpush.xpose.msra.mxu0 0.0
        %1919 = vmatpush.xpose.msra.mxu0 %v1903
        %1920 = vmatpush.xpose.msra.mxu0 %v1901
        %1921 = vmatmul.f32.gmra.mxu0 %v1897
        %v1922 = vpop.f32.mrf.mxu0
        %v1923 = vadd.f32 0.0, %v1922
        %1924 = vmatmul.f32.gmra.mxu0 %v1899
        %v1925 = vpop.f32.mrf.mxu0
        %v1926 = vadd.f32 0.0, %v1925
        %1927 = vdwg.mxu0
        %v1928 = vmul.f32 %v1923, 0.35355338
        %v1929 = vmul.f32 %v1926, 0.35355338
        %v1930 = vsel %vm624, %v1928, -1e+09
        %v1931 = vsel %vm624, %v1929, -1e+09
        %v1932 = vsel %vm807, %v1930, -inf
        %1933 = vmax.xlane.f32.xlu0 %v1932
        %v1934 = vpop.xlane.xlu0 %1933
        %v1935 = vsel %vm807, %v1931, -inf
        %1936 = vmax.xlane.f32.xlu0 %v1935
        %v1937 = vpop.xlane.xlu0 %1936
        %v1938 = vsub.f32 %v1930, %v1934
        %v1939 = vsub.f32 %v1931, %v1937
        %v1940 = vmul.f32 %v1938, 1.442695
        %v1941 = vpow.pop %v1940
        %v1942 = vmul.f32 %v1939, 1.442695
        %v1943 = vpow.pop %v1942
        %v1944 = vsel %vm807, %v1941, 0.0
        %1945 = vadd.xlane.f32.xlu0 %v1944
        %v1946 = vpop.xlane.xlu0 %1945
        %v1947 = vsel %vm807, %v1943, 0.0
        %1948 = vadd.xlane.f32.xlu0 %v1947
        %v1949 = vpop.xlane.xlu0 %1948
        %v1950 = vrcp.pop %v1946
        %v1951 = vmul.f32 %v1946, %v1950
        %v1952 = vsub.f32 1.0, %v1951
        %v1953 = vmul.f32 %v1950, %v1952
        %v1954 = vadd.f32 %v1950, %v1953
        %vm1955 = vweird.f32 %v1946
        %vm1956 = vweird.f32 %v1950
        %vm1957 = vmor %vm1955, %vm1956
        %v1958 = vsel %vm1957, %v1950, %v1954
        %v1959 = vand.u32 2147483647, %v1946
        %vm1960 = vcmp.eq.f32.partialorder %v1959, 8.507059e+37
        %v1961 = vand.u32 %v1946, 2147483648
        %v1962 = vor.u32 1.1754944e-38, %v1961
        %v1963 = vsel %vm1960, %v1962, %v1958
        %v1964 = vmul.f32 %v1941, %v1963
        %v1965 = vrcp.pop %v1949
        %v1966 = vmul.f32 %v1949, %v1965
        %v1967 = vsub.f32 1.0, %v1966
        %v1968 = vmul.f32 %v1965, %v1967
        %v1969 = vadd.f32 %v1965, %v1968
        %vm1970 = vweird.f32 %v1949
        %vm1971 = vweird.f32 %v1965
        %vm1972 = vmor %vm1970, %vm1971
        %v1973 = vsel %vm1972, %v1965, %v1969
        %v1974 = vand.u32 2147483647, %v1949
        %vm1975 = vcmp.eq.f32.partialorder %v1974, 8.507059e+37
        %v1976 = vand.u32 %v1949, 2147483648
        %v1977 = vor.u32 1.1754944e-38, %v1976
        %v1978 = vsel %vm1975, %v1977, %v1973
        %v1979 = vmul.f32 %v1943, %v1978
        %1980 = vrot.lane.b32.xlu0 %v1634, 48
        %v1981 = vpop.permute.xlu0 %1980
        %1982 = vrot.lane.b32.xlu0 %v1637, 48
        %v1983 = vpop.permute.xlu0 %1982
        %v1987 = vsel %vm807, %v1964, 0
        %v1990 = vsel %vm807, %v1979, 0
        %1992 = vmatpush.msra.mxu0 0.0
        %1993 = vmatpush.msra.mxu0 0.0
        %1994 = vmatpush.msra.mxu0 0.0
        %1995 = vmatpush.msra.mxu0 0.0
        %1996 = vmatpush.msra.mxu0 0.0
        %1997 = vmatpush.msra.mxu0 0.0
        %1998 = vmatpush.msra.mxu0 0.0
        %1999 = vmatpush.msra.mxu0 0.0
        %2000 = vmatpush.msra.mxu0 0.0
        %2001 = vmatpush.msra.mxu0 0.0
        %2002 = vmatpush.msra.mxu0 0.0
        %2003 = vmatpush.msra.mxu0 0.0
        %2004 = vmatpush.msra.mxu0 0.0
        %2005 = vmatpush.msra.mxu0 0.0
        %2006 = vmatpush.msra.mxu0 %v1983
        %2007 = vmatpush.msra.mxu0 %v1981
        %2008 = vmatmul.f32.gmra.mxu0 %v1987
        %v2009 = vpop.f32.mrf.mxu0
        %v2010 = vadd.f32 0.0, %v2009
        %2011 = vmatmul.f32.gmra.mxu0 %v1990
        %v2012 = vpop.f32.mrf.mxu0
        %v2013 = vadd.f32 0.0, %v2012
        %2014 = vdwg.mxu0
        %2015 = vrot.lane.b32.xlu0 %v1634, 104
        %v2016 = vpop.permute.xlu0 %2015
        %2017 = vrot.lane.b32.xlu0 %v1637, 104
        %v2018 = vpop.permute.xlu0 %2017
        %2019 = vrot.lane.b32.xlu0 %v1634, 72
        %v2020 = vpop.permute.xlu0 %2019
        %2021 = vrot.lane.b32.xlu0 %v1637, 72
        %v2022 = vpop.permute.xlu0 %2021
        %v2023 = vsel %vm771, %v2016, 0
        %v2025 = vsel %vm771, %v2018, 0
        %v2027 = vsel %vm771, %v2020, 0
        %v2029 = vsel %vm771, %v2022, 0
        %2031 = vmatpush.xpose.msra.mxu0 0.0
        %2032 = vmatpush.xpose.msra.mxu0 0.0
        %2033 = vmatpush.xpose.msra.mxu0 0.0
        %2034 = vmatpush.xpose.msra.mxu0 0.0
        %2035 = vmatpush.xpose.msra.mxu0 0.0
        %2036 = vmatpush.xpose.msra.mxu0 0.0
        %2037 = vmatpush.xpose.msra.mxu0 0.0
        %2038 = vmatpush.xpose.msra.mxu0 0.0
        %2039 = vmatpush.xpose.msra.mxu0 0.0
        %2040 = vmatpush.xpose.msra.mxu0 0.0
        %2041 = vmatpush.xpose.msra.mxu0 0.0
        %2042 = vmatpush.xpose.msra.mxu0 0.0
        %2043 = vmatpush.xpose.msra.mxu0 0.0
        %2044 = vmatpush.xpose.msra.mxu0 0.0
        %2045 = vmatpush.xpose.msra.mxu0 %v2029
        %2046 = vmatpush.xpose.msra.mxu0 %v2027
        %2047 = vmatmul.f32.gmra.mxu0 %v2023
        %v2048 = vpop.f32.mrf.mxu0
        %v2049 = vadd.f32 0.0, %v2048
        %2050 = vmatmul.f32.gmra.mxu0 %v2025
        %v2051 = vpop.f32.mrf.mxu0
        %v2052 = vadd.f32 0.0, %v2051
        %2053 = vdwg.mxu0
        %v2054 = vmul.f32 %v2049, 0.35355338
        %v2055 = vmul.f32 %v2052, 0.35355338
        %v2056 = vsel %vm624, %v2054, -1e+09
        %v2057 = vsel %vm624, %v2055, -1e+09
        %v2058 = vsel %vm807, %v2056, -inf
        %2059 = vmax.xlane.f32.xlu0 %v2058
        %v2060 = vpop.xlane.xlu0 %2059
        %v2061 = vsel %vm807, %v2057, -inf
        %2062 = vmax.xlane.f32.xlu0 %v2061
        %v2063 = vpop.xlane.xlu0 %2062
        %v2064 = vsub.f32 %v2056, %v2060
        %v2065 = vsub.f32 %v2057, %v2063
        %v2066 = vmul.f32 %v2064, 1.442695
        %v2067 = vpow.pop %v2066
        %v2068 = vmul.f32 %v2065, 1.442695
        %v2069 = vpow.pop %v2068
        %v2070 = vsel %vm807, %v2067, 0.0
        %2071 = vadd.xlane.f32.xlu0 %v2070
        %v2072 = vpop.xlane.xlu0 %2071
        %v2073 = vsel %vm807, %v2069, 0.0
        %2074 = vadd.xlane.f32.xlu0 %v2073
        %v2075 = vpop.xlane.xlu0 %2074
        %v2076 = vrcp.pop %v2072
        %v2077 = vmul.f32 %v2072, %v2076
        %v2078 = vsub.f32 1.0, %v2077
        %v2079 = vmul.f32 %v2076, %v2078
        %v2080 = vadd.f32 %v2076, %v2079
        %vm2081 = vweird.f32 %v2072
        %vm2082 = vweird.f32 %v2076
        %vm2083 = vmor %vm2081, %vm2082
        %v2084 = vsel %vm2083, %v2076, %v2080
        %v2085 = vand.u32 2147483647, %v2072
        %vm2086 = vcmp.eq.f32.partialorder %v2085, 8.507059e+37
        %v2087 = vand.u32 %v2072, 2147483648
        %v2088 = vor.u32 1.1754944e-38, %v2087
        %v2089 = vsel %vm2086, %v2088, %v2084
        %v2090 = vmul.f32 %v2067, %v2089
        %v2091 = vrcp.pop %v2075
        %v2092 = vmul.f32 %v2075, %v2091
        %v2093 = vsub.f32 1.0, %v2092
        %v2094 = vmul.f32 %v2091, %v2093
        %v2095 = vadd.f32 %v2091, %v2094
        %vm2096 = vweird.f32 %v2075
        %vm2097 = vweird.f32 %v2091
        %vm2098 = vmor %vm2096, %vm2097
        %v2099 = vsel %vm2098, %v2091, %v2095
        %v2100 = vand.u32 2147483647, %v2075
        %vm2101 = vcmp.eq.f32.partialorder %v2100, 8.507059e+37
        %v2102 = vand.u32 %v2075, 2147483648
        %v2103 = vor.u32 1.1754944e-38, %v2102
        %v2104 = vsel %vm2101, %v2103, %v2099
        %v2105 = vmul.f32 %v2069, %v2104
        %2106 = vrot.lane.b32.xlu0 %v1634, 40
        %v2107 = vpop.permute.xlu0 %2106
        %2108 = vrot.lane.b32.xlu0 %v1637, 40
        %v2109 = vpop.permute.xlu0 %2108
        %v2113 = vsel %vm807, %v2090, 0
        %v2116 = vsel %vm807, %v2105, 0
        %2118 = vmatpush.msra.mxu0 0.0
        %2119 = vmatpush.msra.mxu0 0.0
        %2120 = vmatpush.msra.mxu0 0.0
        %2121 = vmatpush.msra.mxu0 0.0
        %2122 = vmatpush.msra.mxu0 0.0
        %2123 = vmatpush.msra.mxu0 0.0
        %2124 = vmatpush.msra.mxu0 0.0
        %2125 = vmatpush.msra.mxu0 0.0
        %2126 = vmatpush.msra.mxu0 0.0
        %2127 = vmatpush.msra.mxu0 0.0
        %2128 = vmatpush.msra.mxu0 0.0
        %2129 = vmatpush.msra.mxu0 0.0
        %2130 = vmatpush.msra.mxu0 0.0
        %2131 = vmatpush.msra.mxu0 0.0
        %2132 = vmatpush.msra.mxu0 %v2109
        %2133 = vmatpush.msra.mxu0 %v2107
        %2134 = vmatmul.f32.gmra.mxu0 %v2113
        %v2135 = vpop.f32.mrf.mxu0
        %v2136 = vadd.f32 0.0, %v2135
        %2137 = vmatmul.f32.gmra.mxu0 %v2116
        %v2138 = vpop.f32.mrf.mxu0
        %v2139 = vadd.f32 0.0, %v2138
        %2140 = vdwg.mxu0
        %2143 = vrot.lane.b32.xlu0 %v1884, 8
        %v2144 = vpop.permute.xlu0 %2143
        %2145 = vrot.lane.b32.xlu0 %v1887, 8
        %v2146 = vpop.permute.xlu0 %2145
        %2151 = vrot.lane.b32.xlu0 %v2010, 16
        %v2152 = vpop.permute.xlu0 %2151
        %2153 = vrot.lane.b32.xlu0 %v2013, 16
        %v2154 = vpop.permute.xlu0 %2153
        %2159 = vrot.lane.b32.xlu0 %v2136, 24
        %v2160 = vpop.permute.xlu0 %2159
        %2161 = vrot.lane.b32.xlu0 %v2139, 24
        %v2162 = vpop.permute.xlu0 %2161
        %v2165 = vsel %vm771, %v1758, %v2144
        %v2166 = vsel %vm771, %v1761, %v2146
        %v2167 = vsel %vm807, %v2165, %v2152
        %v2168 = vsel %vm807, %v2166, %v2154
        %v2169 = vsel %vm1297, %v2167, %v2160
        %v2170 = vsel %vm1297, %v2168, %v2162
        %s2171 = scalar_lea.vmem %s4, 32
        %v2172 = vld [vmem:[%s2171] sm:$0xff]
        %v2173 = vld [vmem:[%s2171 + $0x8] sm:$0xff]
        %v2174 = vld [vmem:[%s2171 + $0x10] sm:$0xff]
        %v2175 = vld [vmem:[%s2171 + $0x18] sm:$0xff]
        %s2176 = scalar_lea.vmem [#allocation7], 1
        %v2177 = vld [vmem:[%s2176] sm:$0x1]
        %v2179 = vperm.slane %v2177, 0
        %v2182 = vsel %vm627, %v2169, 0
        %v2185 = vsel %vm627, %v2170, 0
        %2187 = vmatpush.msra.mxu0 0.0
        %2188 = vmatpush.msra.mxu0 0.0
        %2189 = vmatpush.msra.mxu0 0.0
        %2190 = vmatpush.msra.mxu0 0.0
        %2191 = vmatpush.msra.mxu0 0.0
        %2192 = vmatpush.msra.mxu0 0.0
        %2193 = vmatpush.msra.mxu0 0.0
        %2194 = vmatpush.msra.mxu0 0.0
        %2195 = vmatpush.msra.mxu0 0.0
        %2196 = vmatpush.msra.mxu0 0.0
        %2197 = vmatpush.msra.mxu0 0.0
        %2198 = vmatpush.msra.mxu0 0.0
        %2199 = vmatpush.msra.mxu0 %v2175
        %2200 = vmatpush.msra.mxu0 %v2174
        %2201 = vmatpush.msra.mxu0 %v2173
        %2202 = vmatpush.msra.mxu0 %v2172
        %2203 = vmatmul.f32.gmra.mxu0 %v2182
        %v2204 = vpop.f32.mrf.mxu0
        %v2205 = vadd.f32 %v2179, %v2204
        %2206 = vmatmul.f32.gmra.mxu0 %v2185
        %v2207 = vpop.f32.mrf.mxu0
        %v2208 = vadd.f32 %v2179, %v2207
        %2209 = vdwg.mxu0
        %v2210 = vadd.f32 %v1508, %v2205
        %v2211 = vadd.f32 %v1509, %v2208
        %s2212 = scalar_lea.vmem %s12, 1
        %v2213 = vld [vmem:[%s2212] sm:$0x1]
        %s2214 = scalar_lea.vmem [#allocation14], 1
        %v2215 = vld [vmem:[%s2214] sm:$0x1]
        %v2216 = vsel %vm627, %v2210, 0.0
        %2217 = vadd.xlane.f32.xlu0 %v2216
        %v2218 = vpop.xlane.xlu0 %2217
        %v2219 = vsel %vm627, %v2211, 0.0
        %2220 = vadd.xlane.f32.xlu0 %v2219
        %v2221 = vpop.xlane.xlu0 %2220
        %v2222 = vmul.f32 %v2218, %v640
        %v2223 = vmul.f32 %v2221, %v640
        %v2224 = vsub.f32 %v2210, %v2222
        %v2225 = vsub.f32 %v2211, %v2223
        %v2226 = vmul.f32 %v2224, %v2224
        %v2227 = vmul.f32 %v2225, %v2225
        %v2228 = vsel %vm627, %v2226, 0.0
        %2229 = vadd.xlane.f32.xlu0 %v2228
        %v2230 = vpop.xlane.xlu0 %2229
        %v2231 = vsel %vm627, %v2227, 0.0
        %2232 = vadd.xlane.f32.xlu0 %v2231
        %v2233 = vpop.xlane.xlu0 %2232
        %v2234 = vmul.f32 %v2230, %v659
        %v2235 = vmul.f32 %v2233, %v659
        %v2237 = vperm.slane %v2213, 0
        %v2239 = vmul.f32 %v2237, %v2224
        %v2240 = vmul.f32 %v2237, %v2225
        %v2241 = vrsqrt.pop %v2234
        %v2242 = vmul.f32 %v2241, %v2234
        %v2243 = vmul.f32 %v2242, %v2241
        %v2244 = vmul.f32 0.5, %v2243
        %v2245 = vsub.f32 1.5, %v2244
        %v2246 = vmul.f32 %v2241, %v2245
        %v2247 = vmul.f32 %v2234, %v2246
        %vm2248 = vcmp.eq.f32.partialorder %v2234, inf
        %v2249 = vsel %vm2248, %v2234, %v2247
        %vm2250 = vcmp.eq.f32.partialorder %v2234, 0.0
        %v2251 = vand.u32 %v2234, 2147483648
        %v2252 = vsel %vm2250, %v2251, %v2249
        %v2253 = vrsqrt.pop %v2235
        %v2254 = vmul.f32 %v2253, %v2235
        %v2255 = vmul.f32 %v2254, %v2253
        %v2256 = vmul.f32 0.5, %v2255
        %v2257 = vsub.f32 1.5, %v2256
        %v2258 = vmul.f32 %v2253, %v2257
        %v2259 = vmul.f32 %v2235, %v2258
        %vm2260 = vcmp.eq.f32.partialorder %v2235, inf
        %v2261 = vsel %vm2260, %v2235, %v2259
        %vm2262 = vcmp.eq.f32.partialorder %v2235, 0.0
        %v2263 = vand.u32 %v2235, 2147483648
        %v2264 = vsel %vm2262, %v2263, %v2261
        %v2265 = vadd.f32 %v2252, 1e-06
        %v2266 = vadd.f32 %v2264, 1e-06
        %v2267 = vrcp.pop %v2265
        %v2268 = vmul.f32 %v2265, %v2267
        %v2269 = vsub.f32 1.0, %v2268
        %v2270 = vmul.f32 %v2267, %v2269
        %v2271 = vadd.f32 %v2267, %v2270
        %vm2272 = vweird.f32 %v2265
        %vm2273 = vweird.f32 %v2267
        %vm2274 = vmor %vm2272, %vm2273
        %v2275 = vsel %vm2274, %v2267, %v2271
        %v2276 = vand.u32 2147483647, %v2265
        %vm2277 = vcmp.eq.f32.partialorder %v2276, 8.507059e+37
        %v2278 = vand.u32 %v2265, 2147483648
        %v2279 = vor.u32 1.1754944e-38, %v2278
        %v2280 = vsel %vm2277, %v2279, %v2275
        %v2281 = vmul.f32 %v2239, %v2280
        %v2282 = vrcp.pop %v2266
        %v2283 = vmul.f32 %v2266, %v2282
        %v2284 = vsub.f32 1.0, %v2283
        %v2285 = vmul.f32 %v2282, %v2284
        %v2286 = vadd.f32 %v2282, %v2285
        %vm2287 = vweird.f32 %v2266
        %vm2288 = vweird.f32 %v2282
        %vm2289 = vmor %vm2287, %vm2288
        %v2290 = vsel %vm2289, %v2282, %v2286
        %v2291 = vand.u32 2147483647, %v2266
        %vm2292 = vcmp.eq.f32.partialorder %v2291, 8.507059e+37
        %v2293 = vand.u32 %v2266, 2147483648
        %v2294 = vor.u32 1.1754944e-38, %v2293
        %v2295 = vsel %vm2292, %v2294, %v2290
        %v2296 = vmul.f32 %v2240, %v2295
        %v2298 = vperm.slane %v2215, 0
        %v2300 = vadd.f32 %v2281, %v2298
        %v2301 = vadd.f32 %v2296, %v2298
        %s2302 = scalar_lea.vmem %s6, 32
        %v2303 = vld [vmem:[%s2302] sm:$0xff]
        %v2304 = vld [vmem:[%s2302 + $0x8] sm:$0xff]
        %v2305 = vld [vmem:[%s2302 + $0x10] sm:$0xff]
        %v2306 = vld [vmem:[%s2302 + $0x18] sm:$0xff]
        %s2307 = scalar_lea.vmem [#allocation8], 1
        %v2308 = vld [vmem:[%s2307] sm:$0x1]
        %v2310 = vperm.slane %v2308, 0
        %v2313 = vsel %vm627, %v2300, 0
        %v2316 = vsel %vm627, %v2301, 0
        %2318 = vmatpush.msra.mxu0 0.0
        %2319 = vmatpush.msra.mxu0 0.0
        %2320 = vmatpush.msra.mxu0 0.0
        %2321 = vmatpush.msra.mxu0 0.0
        %2322 = vmatpush.msra.mxu0 0.0
        %2323 = vmatpush.msra.mxu0 0.0
        %2324 = vmatpush.msra.mxu0 0.0
        %2325 = vmatpush.msra.mxu0 0.0
        %2326 = vmatpush.msra.mxu0 0.0
        %2327 = vmatpush.msra.mxu0 0.0
        %2328 = vmatpush.msra.mxu0 0.0
        %2329 = vmatpush.msra.mxu0 0.0
        %2330 = vmatpush.msra.mxu0 %v2306
        %2331 = vmatpush.msra.mxu0 %v2305
        %2332 = vmatpush.msra.mxu0 %v2304
        %2333 = vmatpush.msra.mxu0 %v2303
        %2334 = vmatmul.f32.gmra.mxu0 %v2313
        %v2335 = vpop.f32.mrf.mxu0
        %v2336 = vadd.f32 %v2310, %v2335
        %2337 = vmatmul.f32.gmra.mxu0 %v2316
        %v2338 = vpop.f32.mrf.mxu0
        %v2339 = vadd.f32 %v2310, %v2338
        %2340 = vdwg.mxu0
        %v2341 = vmax.f32 %v2336, 0.0
        %v2342 = vmax.f32 %v2339, 0.0
        %s2343 = scalar_lea.vmem %s8, 64
        %v2344 = vld [vmem:[%s2343] sm:$0xff]
        %v2345 = vld [vmem:[%s2343 + $0x8] sm:$0xff]
        %v2346 = vld [vmem:[%s2343 + $0x10] sm:$0xff]
        %v2347 = vld [vmem:[%s2343 + $0x18] sm:$0xff]
        %v2348 = vld [vmem:[%s2343 + $0x20] sm:$0xff]
        %v2349 = vld [vmem:[%s2343 + $0x28] sm:$0xff]
        %v2350 = vld [vmem:[%s2343 + $0x30] sm:$0xff]
        %v2351 = vld [vmem:[%s2343 + $0x38] sm:$0xff]
        %s2352 = scalar_lea.vmem [#allocation10], 1
        %v2353 = vld [vmem:[%s2352] sm:$0x1]
        %v2355 = vperm.slane %v2353, 0
        %v2358 = vsel %vm1478, %v2341, 0
        %v2361 = vsel %vm1478, %v2342, 0
        %2363 = vmatpush.msra.mxu0 0.0
        %2364 = vmatpush.msra.mxu0 0.0
        %2365 = vmatpush.msra.mxu0 0.0
        %2366 = vmatpush.msra.mxu0 0.0
        %2367 = vmatpush.msra.mxu0 0.0
        %2368 = vmatpush.msra.mxu0 0.0
        %2369 = vmatpush.msra.mxu0 0.0
        %2370 = vmatpush.msra.mxu0 0.0
        %2371 = vmatpush.msra.mxu0 %v2351
        %2372 = vmatpush.msra.mxu0 %v2350
        %2373 = vmatpush.msra.mxu0 %v2349
        %2374 = vmatpush.msra.mxu0 %v2348
        %2375 = vmatpush.msra.mxu0 %v2347
        %2376 = vmatpush.msra.mxu0 %v2346
        %2377 = vmatpush.msra.mxu0 %v2345
        %2378 = vmatpush.msra.mxu0 %v2344
        %2379 = vmatmul.f32.gmra.mxu0 %v2358
        %v2380 = vpop.f32.mrf.mxu0
        %v2381 = vadd.f32 %v2355, %v2380
        %2382 = vmatmul.f32.gmra.mxu0 %v2361
        %v2383 = vpop.f32.mrf.mxu0
        %v2384 = vadd.f32 %v2355, %v2383
        %2385 = vdwg.mxu0
        %v2386 = vadd.f32 %v2210, %v2381
        %v2387 = vadd.f32 %v2211, %v2384
        %2388 = vst.msk [vmem:[%s614] sm:$0xff] %vm627, %v2386
        %2389 = vst.msk [vmem:[%s614 + $0x8] sm:$0xff] %vm627, %v2387
        %s2390 = sand.u32 %s347, 1
        %s2391 = scalar_lea.sflag [#allocation4], %s2390
        %s2392 = sand.u32 %s347, 1
        %s2393 = smul.addr %s2392, 16
        %s2394 = scalar_lea.vmem [#allocation16], %s2393
        // Predicated region
        $region109: #{encoder_forward.1} parent=75 // pred_check
          %p2395 = pneg %p357
        $region110: #{encoder_forward.1} parent=75 // pred_check_branch
          %2397 = sbr.rel (%p2395) target = $region112
        $region111: #{encoder_forward.1} parent=75 // pred_region
          %2399 = vsyncadd %s2391, 0
          %s2400 = smul.addr %s35, 2
          %s2401 = smul.addr %s2400, 8
          %s2402 = scalar_lea.hbm %s14, %s2401
          %s2403 = sshll.u32 %s2394, 4
          %s2404 = int_to_ptr.vmem [resolvable:$true] %s2403
          %s2405 = sshll.u32 %s2402, 4
          %s2406 = int_to_ptr.hbm [resolvable:$true] %s2405
          %2411 = dma.vmem_to_hbm [thread:$0]  %s2404, 256, %s2406, %s2391, 128, 128, 8
        $region112: #{encoder_forward.1} parent=75 // pred_fallthru
          _
      $region76: #{encoder_forward.1} parent=5 // pred_fallthru
        _
      %p2412 = scmp.le.s32.totalorder 2, %s30
      // Predicated region
      $region113: #{encoder_forward.1} parent=5 // pred_check
        %p2413 = pneg %p2412
      $region114: #{encoder_forward.1} parent=5 // pred_check_branch
        %2415 = sbr.rel (%p2413) target = $region116
      $region115: #{encoder_forward.1} parent=5 // pred_region
        %s2416 = ssub.s32 %s30, 2
        // Predicated region
        $region117: #{encoder_forward.1} parent=115 // pred_check
          %p2417 = pneg %p363
        $region118: #{encoder_forward.1} parent=115 // pred_check_branch
          %2419 = sbr.rel (%p2417) target = $region120
        $region119: #{encoder_forward.1} parent=115 // pred_region
          %s2420 = sand.u32 %s348, 1
          %s2421 = scalar_lea.sflag [#allocation4], %s2420
          %s2422 = sand.u32 %s348, 1
          %s2423 = smul.addr %s2422, 16
          %s2424 = scalar_lea.vmem [#allocation16], %s2423
          %2426 = dma.done %s2421, 256
        $region120: #{encoder_forward.1} parent=115 // pred_fallthru
          _
      $region116: #{encoder_forward.1} parent=5 // pred_fallthru
        _
    $region6: #{encoder_forward.1} parent=1 // loop_footer
      %s34 = sadd.s32 1, %s30
    $region7: #{encoder_forward.1} parent=1 // loop_footer_branch
      %29 = sbr.rel target = $region3
    $region8: #{encoder_forward.1} parent=1 // loop_exit
      _
    %2427 = vsyncpa [#allocation3], 1
    %s2428 = scalar_lea.sflag [#allocation3], 1
    %2429 = vsyncpa %s2428, 1
    %2430 = vsyncpa [#allocation6], 1
    %2431 = vsyncpa [#allocation9], 1
    %2432 = vsyncpa [#allocation12], 1
    %2433 = vsyncpa [#allocation15], 1
    %2434 = vsyncpa [#allocation4], 1
    %s2435 = scalar_lea.sflag [#allocation4], 1
    %2436 = vsyncpa %s2435, 1

</llo_original>
